<compile_context>
chip_gen: v7x
topology: tpu7x:2x2x1
jax: 0.10.0
libtpu: 0.0.40
codegen_flags: <defaults>
</compile_context>

<pallas_src>
import jax
import jax.numpy as jnp
from jax.experimental import pallas as pl

LANE = 128  # lane width the projection output is padded to


# ----------------------------------------------------------------------------
# Fused Pallas kernel: no grid, one invocation = all decoder layers.
#   per layer: unpool-scatter -> GATConv (att folded into matmuls, self-loops,
#   LeakyReLU(0.2), masked softmax, bias) -> LayerNorm -> exact GELU.
# ----------------------------------------------------------------------------
def fused_decoder_kernel(z_ref, scat_ref, ealpha_ref, w_ref, vsrc_ref,
                         bias_ref, gamma_ref, beta_ref, o_ref):
    num_layers = scat_ref.shape[0]
    e = z_ref.shape[1]

    x = z_ref[...]                                                        # [Nm, E] f32
    for l in range(num_layers):      # static unroll: scheduler sees across layers
        # Unpooling: unpooled_x[perm] = x, as a one-hot scatter matmul (exact in bf16).
        x_un = jnp.dot(scat_ref[l], x.astype(jnp.bfloat16),
                       preferred_element_type=jnp.float32)                # [Nm, E]
        x_un_bf = x_un.astype(jnp.bfloat16)

        # Shared GAT projection with W@att_dst^T folded in as column E (zeros beyond)
        # -> one lane-dense 128-wide bf16 MXU pass produces both h and the dst logits.
        h_aug = jnp.dot(x_un_bf, w_ref[l], preferred_element_type=jnp.float32)  # [Nm, 128]
        a_dst = h_aug[:, e:e + 1]                                          # [Nm, 1]

        # Source logits a_src[j] = <x_un[j], W @ att_src^T>  -> [1, Nm]
        a_src = jax.lax.dot_general(vsrc_ref[l], x_un_bf, (((1,), (1,)), ((), ())),
                                    preferred_element_type=jnp.float32)    # [1, Nm]

        # Attention logits (adjacency mask pre-folded into ealpha as -1e30),
        # LeakyReLU(0.2), masked per-destination softmax (exact reciprocal).
        s = a_dst + a_src + ealpha_ref[l]                                  # [Nm, Nm]
        s = jnp.maximum(s, 0.2 * s)
        m = jnp.max(s, axis=-1, keepdims=True)
        p = jnp.exp(s - m)                         # masked entries underflow to 0
        p = p / jnp.sum(p, axis=-1, keepdims=True)

        # Aggregate messages (still 128 lanes wide for the MXU), slice the embedding.
        out_aug = jnp.dot(p.astype(jnp.bfloat16), h_aug.astype(jnp.bfloat16),
                          preferred_element_type=jnp.float32)              # [Nm, 128]
        out = out_aug[:, :e] + bias_ref[l]                                 # [Nm, E]

        # LayerNorm over the embedding dim (eps = 1e-5, like nn.LayerNorm).
        mu = jnp.mean(out, axis=-1, keepdims=True)
        var = jnp.mean(jnp.square(out - mu), axis=-1, keepdims=True)
        y = (out - mu) * jax.lax.rsqrt(var + 1e-5)
        y = y * gamma_ref[l] + beta_ref[l]

        # Exact GELU (erf form, matching nn.GELU default); dropout(p=0.1) = identity.
        x = 0.5 * y * (1.0 + jax.lax.erf(y * 0.7071067811865476))

    o_ref[...] = x


def build_fused_decoder(num_layers, n_max, emb):
    flops = num_layers * 2 * (n_max * n_max * emb        # scat @ x
                              + n_max * emb * LANE       # x_un @ w_aug
                              + emb * n_max              # v_src . x_un
                              + n_max * n_max * LANE)    # p @ h_aug
    transc = num_layers * (n_max * n_max + n_max * emb + 2 * n_max)
    bytes_acc = (4 * 2 * n_max * emb
                 + num_layers * (2 * n_max * n_max       # scat (bf16)
                                 + 4 * n_max * n_max     # ealpha (f32)
                                 + 2 * emb * LANE        # w_aug (bf16)
                                 + 2 * emb               # v_src (bf16)
                                 + 3 * 4 * emb))         # bias/gamma/beta (f32)

    # No grid, no BlockSpecs: every operand is a single whole-array VMEM block
    # (total footprint ~0.1 MiB -- fits every generation with >100x margin).
    call = pl.pallas_call(
        fused_decoder_kernel,
        out_shape=jax.ShapeDtypeStruct((n_max, emb), jnp.float32),
        cost_estimate=pl.CostEstimate(flops=flops, transcendentals=transc,
                                      bytes_accessed=bytes_acc),
    )

    @jax.jit
    def forward(z, consts):
        z_pad = jnp.zeros((n_max, emb), jnp.float32).at[:z.shape[0], :].set(z)
        return call(z_pad, consts["scat"], consts["ealpha"], consts["w_aug"],
                    consts["v_src"], consts["bias"], consts["gamma"], consts["beta"])

    return forward


# ----------------------------------------------------------------------------
# One-time plain-JAX precompute: padded dense graph tensors + folded weights
# ----------------------------------------------------------------------------
def build_layer_constants(perm, n_curr, edge_index, edge_attr, p, n_max, emb):
    # One-hot unpool scatter:  (scat @ x)[perm[k]] = x[k]; padded rows/cols = 0.
    scat = jnp.zeros((n_max, n_max), jnp.float32).at[perm, jnp.arange(n_curr)].set(1.0)

    src, dst = edge_index[0], edge_index[1]
    mask = jnp.zeros((n_max, n_max), jnp.float32).at[dst, src].set(1.0)
    attr = jnp.zeros((n_max, n_max), jnp.float32).at[dst, src].set(edge_attr[:, 0])

    # add_self_loops(fill_value='mean'): self-loop attr = mean of incoming attrs
    # (0 if none).  Diagonal forced for *all* rows (incl. padded) so every softmax
    # row stays finite; padded-row output is discarded by the next layer's scatter.
    deg = jnp.sum(mask, axis=1)
    loop_attr = jnp.where(deg > 0, jnp.sum(attr, axis=1) / jnp.maximum(deg, 1.0), 0.0)
    diag = jnp.arange(n_max)
    mask = mask.at[diag, diag].set(1.0)
    attr = attr.at[diag, diag].set(loop_attr)

    # edge_dim=1: alpha_edge(e) = e * <w_edge, att_edge>.  Adjacency mask folded in
    # as -1e30 (still underflows exp after LeakyReLU), so the kernel needs no mask.
    c_e = jnp.sum(p["w_edge"] * p["att_edge"])
    ealpha = jnp.where(mask > 0.0, attr * c_e, -1e30)

    # Fold att_dst into the projection matmul; pad the output width to 128 lanes.
    v_dst = p["w"] @ p["att_dst"].T                                       # [E, 1]
    w_aug = jnp.zeros((emb, LANE), jnp.float32)
    w_aug = w_aug.at[:, :emb].set(p["w"]).at[:, emb:emb + 1].set(v_dst)
    v_src = p["att_src"] @ p["w"].T                                       # [1, E]

    return (scat.astype(jnp.bfloat16), ealpha,
            w_aug.astype(jnp.bfloat16), v_src.astype(jnp.bfloat16))


def precompute_decoder_constants(layer_data, params, n_max, emb):
    scats, ealphas, w_augs, v_srcs = [], [], [], []
    biases, gammas, betas = [], [], []
    for i, p in enumerate(params):
        enc_idx = len(layer_data) - 1 - i
        assert enc_idx >= 1, "more conv layers than encoder levels"
        curr = layer_data[enc_idx]
        prev = layer_data[enc_idx - 1]
        n_curr = curr["perm"].shape[0]
        scat, ealpha, w_aug, v_src = build_layer_constants(
            curr["perm"], n_curr, prev["edge_index"], prev["edge_attr"],
            p, n_max, emb)
        scats.append(scat); ealphas.append(ealpha)
        w_augs.append(w_aug); v_srcs.append(v_src)
        biases.append(p["bias"]); gammas.append(p["gamma"]); betas.append(p["beta"])
    return dict(
        scat=jnp.stack(scats), ealpha=jnp.stack(ealphas),
        w_aug=jnp.stack(w_augs), v_src=jnp.stack(v_srcs),
        bias=jnp.stack(biases), gamma=jnp.stack(gammas), beta=jnp.stack(betas))


# ----------------------------------------------------------------------------
# Pure-JAX dense reference (true per-layer sizes, all f32) for correctness
# ----------------------------------------------------------------------------
def reference_forward(z, layer_data, params):
    x = z
    for i, p in enumerate(params):
        enc_idx = len(layer_data) - 1 - i
        curr = layer_data[enc_idx]
        prev = layer_data[enc_idx - 1]
        n_t = curr["prev_node"]
        xu = jnp.zeros((n_t, x.shape[1]), jnp.float32).at[curr["perm"]].set(x)
        src, dst = prev["edge_index"][0], prev["edge_index"][1]
        mask = jnp.zeros((n_t, n_t), jnp.float32).at[dst, src].set(1.0)
        attr = jnp.zeros((n_t, n_t), jnp.float32).at[dst, src].set(prev["edge_attr"][:, 0])
        deg = jnp.sum(mask, axis=1)
        loop_attr = jnp.where(deg > 0, jnp.sum(attr, axis=1) / jnp.maximum(deg, 1.0), 0.0)
        d = jnp.arange(n_t)
        mask = mask.at[d, d].set(1.0)
        attr = attr.at[d, d].set(loop_attr)
        h = xu @ p["w"]
        a_dst = h @ p["att_dst"].T
        a_src = (h @ p["att_src"].T).T
        c_e = jnp.sum(p["w_edge"] * p["att_edge"])
        s = a_dst + a_src + attr * c_e
        s = jnp.where(s >= 0.0, s, 0.2 * s)
        s = jnp.where(mask > 0.0, s, -jnp.inf)
        pm = jax.nn.softmax(s, axis=-1)
        out = pm @ h + p["bias"]
        mu = jnp.mean(out, axis=-1, keepdims=True)
        var = jnp.mean(jnp.square(out - mu), axis=-1, keepdims=True)
        y = (out - mu) / jnp.sqrt(var + 1e-5)
        y = y * p["gamma"] + p["beta"]
        x = 0.5 * y * (1.0 + jax.lax.erf(y * 0.7071067811865476))
    return x


# ----------------------------------------------------------------------------
# Deterministic synthetic setup
# ----------------------------------------------------------------------------
def init_params(key, e):
    ks = jax.random.split(key, 8)
    s = 0.2
    return dict(
        w=jax.random.normal(ks[0], (e, e), jnp.float32) / jnp.sqrt(jnp.float32(e)),
        att_src=jax.random.normal(ks[1], (1, e), jnp.float32) * s,
        att_dst=jax.random.normal(ks[2], (1, e), jnp.float32) * s,
        att_edge=jax.random.normal(ks[3], (e,), jnp.float32) * s,
        w_edge=jax.random.normal(ks[4], (e,), jnp.float32) * s,
        bias=jax.random.normal(ks[5], (1, e), jnp.float32) * 0.1,
        gamma=jnp.ones((1, e), jnp.float32) + jax.random.normal(ks[6], (1, e), jnp.float32) * 0.05,
        beta=jax.random.normal(ks[7], (1, e), jnp.float32) * 0.05,
    )


def make_edges(n, key):
    idx = jnp.arange(n)
    src = jnp.concatenate([idx, idx])
    dst = jnp.concatenate([(idx + 1) % n, (idx + 3) % n])
    edge_index = jnp.stack([src, dst]).astype(jnp.int32)
    edge_attr = jax.random.uniform(key, (src.shape[0], 1), jnp.float32)
    return edge_index, edge_attr


if __name__ == "__main__":
    EMB = 32            # embedding_size
    NUM_LAYERS = 4      # decoder conv layers
    node_counts = [32, 24, 16, 12, 8]   # encoder levels 0..4 (level 0 = original graph)
    N_MAX = max(node_counts)            # 32: sublane-aligned padded node count

    key = jax.random.PRNGKey(0)
    keys = jax.random.split(key, 64)
    ki = 0

    # layer_data[k] ~ (x, edge_index, edge_attr, batch, perm, prev_node); we keep
    # only the fields the decoder forward actually reads.
    layer_data = []
    for lvl, n in enumerate(node_counts):
        ei, ea = make_edges(n, keys[ki]); ki += 1
        if lvl == 0:
            perm, prev_node = None, None
        else:
            prev_n = node_counts[lvl - 1]
            perm = jax.random.permutation(keys[ki], prev_n)[:n]; ki += 1
            prev_node = prev_n
        layer_data.append(dict(edge_index=ei, edge_attr=ea, perm=perm, prev_node=prev_node))

    z = jax.random.normal(keys[ki], (node_counts[-1], EMB), jnp.float32) * 0.5; ki += 1
    params = [init_params(keys[ki + j], EMB) for j in range(NUM_LAYERS)]

    # One-time precompute of padded dense-graph constants (static per topology).
    consts = precompute_decoder_constants(layer_data, params, N_MAX, EMB)
    forward = build_fused_decoder(NUM_LAYERS, N_MAX, EMB)

    out = jax.block_until_ready(forward(z, consts))[:node_counts[0]]

    assert out.shape == (node_counts[0], EMB), out.shape
    assert bool(jnp.all(jnp.isfinite(out)))

    # Correctness check vs an all-f32 dense JAX reference at true per-layer sizes.
    # bf16 MXU operands (per perf review) across 4 stacked GAT+LayerNorm layers give
    # ~1e-2-level deviations; genuine bugs (mask/fold/scatter errors) show up as O(1).
    with jax.default_matmul_precision("highest"):
        ref = reference_forward(z, layer_data, params)
    err_max = float(jnp.max(jnp.abs(out - ref)))
    err_rel = float(jnp.linalg.norm(out - ref) / jnp.linalg.norm(ref))
    assert err_max < 1.5e-1, f"max abs diff vs dense JAX reference too large: {err_max}"
    assert err_rel < 5e-2, f"relative L2 diff vs dense JAX reference too large: {err_rel}"

    print("KERNEL_OK")
</pallas_src>

<mosaic_0001>
module attributes {stable_mosaic.version = 11 : i64} {
  func.func @fused_decoder_kernel(%arg0: memref<32x32xf32, #tpu.memory_space<vmem>>, %arg1: memref<4x32x32xbf16, #tpu.memory_space<vmem>>, %arg2: memref<4x32x32xf32, #tpu.memory_space<vmem>>, %arg3: memref<4x32x128xbf16, #tpu.memory_space<vmem>>, %arg4: memref<4x1x32xbf16, #tpu.memory_space<vmem>>, %arg5: memref<4x1x32xf32, #tpu.memory_space<vmem>>, %arg6: memref<4x1x32xf32, #tpu.memory_space<vmem>>, %arg7: memref<4x1x32xf32, #tpu.memory_space<vmem>>, %arg8: memref<32x32xf32, #tpu.memory_space<vmem>>) attributes {dimension_semantics = [], scalar_prefetch = 0 : i64, scratch_operands = 0 : i64, tpu.core_type = #tpu.core_type<tc>} {
    %c0 = arith.constant 0 : index
    %c0_0 = arith.constant 0 : index
    %0 = vector.load %arg0[%c0, %c0_0] : memref<32x32xf32, #tpu.memory_space<vmem>>, vector<32x32xf32>
    %c0_1 = arith.constant 0 : index
    %c0_2 = arith.constant 0 : index
    %c0_3 = arith.constant 0 : index
    %1 = vector.load %arg1[%c0_1, %c0_2, %c0_3] : memref<4x32x32xbf16, #tpu.memory_space<vmem>>, vector<1x32x32xbf16>
    %2 = vector.shape_cast %1 : vector<1x32x32xbf16> to vector<32x32xbf16>
    %3 = arith.truncf %0 : vector<32x32xf32> to vector<32x32xbf16>
    %cst = arith.constant dense<0.000000e+00> : vector<32x32xf32>
    %4 = tpu.matmul %2, %3, %cst {dimension_numbers = #tpu.dot_dimension_numbers<[1], [0], [0], [1], [0, 0, 1, 1], [], []>} : vector<32x32xbf16>, vector<32x32xbf16>, vector<32x32xf32> -> vector<32x32xf32>
    %5 = arith.truncf %4 : vector<32x32xf32> to vector<32x32xbf16>
    %c0_4 = arith.constant 0 : index
    %c0_5 = arith.constant 0 : index
    %c0_6 = arith.constant 0 : index
    %6 = vector.load %arg3[%c0_4, %c0_5, %c0_6] : memref<4x32x128xbf16, #tpu.memory_space<vmem>>, vector<1x32x128xbf16>
    %7 = vector.shape_cast %6 : vector<1x32x128xbf16> to vector<32x128xbf16>
    %cst_7 = arith.constant dense<0.000000e+00> : vector<32x128xf32>
    %8 = tpu.matmul %5, %7, %cst_7 {dimension_numbers = #tpu.dot_dimension_numbers<[1], [0], [0], [1], [0, 0, 1, 1], [], []>} : vector<32x32xbf16>, vector<32x128xbf16>, vector<32x128xf32> -> vector<32x128xf32>
    %9 = vector.extract_strided_slice %8 {offsets = [0, 32], sizes = [32, 1], strides = [1, 1]} : vector<32x128xf32> to vector<32x1xf32>
    %c0_8 = arith.constant 0 : index
    %c0_9 = arith.constant 0 : index
    %c0_10 = arith.constant 0 : index
    %10 = vector.load %arg4[%c0_8, %c0_9, %c0_10] : memref<4x1x32xbf16, #tpu.memory_space<vmem>>, vector<1x1x32xbf16>
    %11 = vector.shape_cast %10 : vector<1x1x32xbf16> to vector<1x32xbf16>
    %cst_11 = arith.constant dense<0.000000e+00> : vector<1x32xf32>
    %12 = tpu.matmul %11, %5, %cst_11 {dimension_numbers = #tpu.dot_dimension_numbers<[1], [1], [0], [0], [0, 0, 1, 0], [], []>} : vector<1x32xbf16>, vector<32x32xbf16>, vector<1x32xf32> -> vector<1x32xf32>
    %13 = vector.broadcast %9 : vector<32x1xf32> to vector<32x32xf32>
    %14 = vector.broadcast %12 : vector<1x32xf32> to vector<32x32xf32>
    %15 = arith.addf %13, %14 : vector<32x32xf32>
    %c0_12 = arith.constant 0 : index
    %c0_13 = arith.constant 0 : index
    %c0_14 = arith.constant 0 : index
    %16 = vector.load %arg2[%c0_12, %c0_13, %c0_14] : memref<4x32x32xf32, #tpu.memory_space<vmem>>, vector<1x32x32xf32>
    %17 = vector.shape_cast %16 : vector<1x32x32xf32> to vector<32x32xf32>
    %18 = arith.addf %15, %17 : vector<32x32xf32>
    %cst_15 = arith.constant 2.000000e-01 : f32
    %19 = vector.broadcast %cst_15 : f32 to vector<32x32xf32>
    %20 = arith.mulf %19, %18 : vector<32x32xf32>
    %21 = arith.maximumf %18, %20 : vector<32x32xf32>
    %cst_16 = arith.constant dense<0xFF800000> : vector<32xf32>
    %22 = vector.multi_reduction <maximumf>, %21, %cst_16 [1] : vector<32x32xf32> to vector<32xf32>
    %23 = vector.shape_cast %22 : vector<32xf32> to vector<32x1xf32>
    %24 = vector.broadcast %23 : vector<32x1xf32> to vector<32x32xf32>
    %25 = arith.subf %21, %24 : vector<32x32xf32>
    %26 = math.exp %25 : vector<32x32xf32>
    %cst_17 = arith.constant dense<0.000000e+00> : vector<32xf32>
    %27 = vector.multi_reduction <add>, %26, %cst_17 [1] : vector<32x32xf32> to vector<32xf32>
    %28 = vector.shape_cast %27 : vector<32xf32> to vector<32x1xf32>
    %29 = vector.broadcast %28 : vector<32x1xf32> to vector<32x32xf32>
    %30 = arith.divf %26, %29 : vector<32x32xf32>
    %31 = arith.truncf %30 : vector<32x32xf32> to vector<32x32xbf16>
    %32 = arith.truncf %8 : vector<32x128xf32> to vector<32x128xbf16>
    %cst_18 = arith.constant dense<0.000000e+00> : vector<32x128xf32>
    %33 = tpu.matmul %31, %32, %cst_18 {dimension_numbers = #tpu.dot_dimension_numbers<[1], [0], [0], [1], [0, 0, 1, 1], [], []>} : vector<32x32xbf16>, vector<32x128xbf16>, vector<32x128xf32> -> vector<32x128xf32>
    %34 = vector.extract_strided_slice %33 {offsets = [0, 0], sizes = [32, 32], strides = [1, 1]} : vector<32x128xf32> to vector<32x32xf32>
    %c0_19 = arith.constant 0 : index
    %c0_20 = arith.constant 0 : index
    %c0_21 = arith.constant 0 : index
    %35 = vector.load %arg5[%c0_19, %c0_20, %c0_21] : memref<4x1x32xf32, #tpu.memory_space<vmem>>, vector<1x1x32xf32>
    %36 = vector.shape_cast %35 : vector<1x1x32xf32> to vector<1x32xf32>
    %37 = vector.broadcast %36 : vector<1x32xf32> to vector<32x32xf32>
    %38 = arith.addf %34, %37 : vector<32x32xf32>
    %cst_22 = arith.constant dense<0.000000e+00> : vector<32xf32>
    %39 = vector.multi_reduction <add>, %38, %cst_22 [1] : vector<32x32xf32> to vector<32xf32>
    %40 = vector.shape_cast %39 : vector<32xf32> to vector<32x1xf32>
    %cst_23 = arith.constant 3.200000e+01 : f32
    %41 = vector.broadcast %cst_23 : f32 to vector<32x1xf32>
    %42 = arith.divf %40, %41 : vector<32x1xf32>
    %43 = vector.broadcast %42 : vector<32x1xf32> to vector<32x32xf32>
    %44 = arith.subf %38, %43 : vector<32x32xf32>
    %45 = arith.mulf %44, %44 : vector<32x32xf32>
    %cst_24 = arith.constant dense<0.000000e+00> : vector<32xf32>
    %46 = vector.multi_reduction <add>, %45, %cst_24 [1] : vector<32x32xf32> to vector<32xf32>
    %47 = vector.shape_cast %46 : vector<32xf32> to vector<32x1xf32>
    %cst_25 = arith.constant 3.200000e+01 : f32
    %48 = vector.broadcast %cst_25 : f32 to vector<32x1xf32>
    %49 = arith.divf %47, %48 : vector<32x1xf32>
    %50 = vector.broadcast %42 : vector<32x1xf32> to vector<32x32xf32>
    %51 = arith.subf %38, %50 : vector<32x32xf32>
    %cst_26 = arith.constant 9.99999974E-6 : f32
    %52 = vector.broadcast %cst_26 : f32 to vector<32x1xf32>
    %53 = arith.addf %49, %52 : vector<32x1xf32>
    %54 = math.rsqrt %53 : vector<32x1xf32>
    %55 = vector.broadcast %54 : vector<32x1xf32> to vector<32x32xf32>
    %56 = arith.mulf %51, %55 : vector<32x32xf32>
    %c0_27 = arith.constant 0 : index
    %c0_28 = arith.constant 0 : index
    %c0_29 = arith.constant 0 : index
    %57 = vector.load %arg6[%c0_27, %c0_28, %c0_29] : memref<4x1x32xf32, #tpu.memory_space<vmem>>, vector<1x1x32xf32>
    %58 = vector.shape_cast %57 : vector<1x1x32xf32> to vector<1x32xf32>
    %59 = vector.broadcast %58 : vector<1x32xf32> to vector<32x32xf32>
    %60 = arith.mulf %56, %59 : vector<32x32xf32>
    %c0_30 = arith.constant 0 : index
    %c0_31 = arith.constant 0 : index
    %c0_32 = arith.constant 0 : index
    %61 = vector.load %arg7[%c0_30, %c0_31, %c0_32] : memref<4x1x32xf32, #tpu.memory_space<vmem>>, vector<1x1x32xf32>
    %62 = vector.shape_cast %61 : vector<1x1x32xf32> to vector<1x32xf32>
    %63 = vector.broadcast %62 : vector<1x32xf32> to vector<32x32xf32>
    %64 = arith.addf %60, %63 : vector<32x32xf32>
    %cst_33 = arith.constant 5.000000e-01 : f32
    %65 = vector.broadcast %cst_33 : f32 to vector<32x32xf32>
    %66 = arith.mulf %65, %64 : vector<32x32xf32>
    %cst_34 = arith.constant 0.707106769 : f32
    %67 = vector.broadcast %cst_34 : f32 to vector<32x32xf32>
    %68 = arith.mulf %64, %67 : vector<32x32xf32>
    %69 = math.erf %68 : vector<32x32xf32>
    %cst_35 = arith.constant 1.000000e+00 : f32
    %70 = vector.broadcast %cst_35 : f32 to vector<32x32xf32>
    %71 = arith.addf %70, %69 : vector<32x32xf32>
    %72 = arith.mulf %66, %71 : vector<32x32xf32>
    %c1 = arith.constant 1 : index
    %c0_36 = arith.constant 0 : index
    %c0_37 = arith.constant 0 : index
    %73 = vector.load %arg1[%c1, %c0_36, %c0_37] : memref<4x32x32xbf16, #tpu.memory_space<vmem>>, vector<1x32x32xbf16>
    %74 = vector.shape_cast %73 : vector<1x32x32xbf16> to vector<32x32xbf16>
    %75 = arith.truncf %72 : vector<32x32xf32> to vector<32x32xbf16>
    %cst_38 = arith.constant dense<0.000000e+00> : vector<32x32xf32>
    %76 = tpu.matmul %74, %75, %cst_38 {dimension_numbers = #tpu.dot_dimension_numbers<[1], [0], [0], [1], [0, 0, 1, 1], [], []>} : vector<32x32xbf16>, vector<32x32xbf16>, vector<32x32xf32> -> vector<32x32xf32>
    %77 = arith.truncf %76 : vector<32x32xf32> to vector<32x32xbf16>
    %c1_39 = arith.constant 1 : index
    %c0_40 = arith.constant 0 : index
    %c0_41 = arith.constant 0 : index
    %78 = vector.load %arg3[%c1_39, %c0_40, %c0_41] : memref<4x32x128xbf16, #tpu.memory_space<vmem>>, vector<1x32x128xbf16>
    %79 = vector.shape_cast %78 : vector<1x32x128xbf16> to vector<32x128xbf16>
    %cst_42 = arith.constant dense<0.000000e+00> : vector<32x128xf32>
    %80 = tpu.matmul %77, %79, %cst_42 {dimension_numbers = #tpu.dot_dimension_numbers<[1], [0], [0], [1], [0, 0, 1, 1], [], []>} : vector<32x32xbf16>, vector<32x128xbf16>, vector<32x128xf32> -> vector<32x128xf32>
    %81 = vector.extract_strided_slice %80 {offsets = [0, 32], sizes = [32, 1], strides = [1, 1]} : vector<32x128xf32> to vector<32x1xf32>
    %c1_43 = arith.constant 1 : index
    %c0_44 = arith.constant 0 : index
    %c0_45 = arith.constant 0 : index
    %82 = vector.load %arg4[%c1_43, %c0_44, %c0_45] : memref<4x1x32xbf16, #tpu.memory_space<vmem>>, vector<1x1x32xbf16>
    %83 = vector.shape_cast %82 : vector<1x1x32xbf16> to vector<1x32xbf16>
    %cst_46 = arith.constant dense<0.000000e+00> : vector<1x32xf32>
    %84 = tpu.matmul %83, %77, %cst_46 {dimension_numbers = #tpu.dot_dimension_numbers<[1], [1], [0], [0], [0, 0, 1, 0], [], []>} : vector<1x32xbf16>, vector<32x32xbf16>, vector<1x32xf32> -> vector<1x32xf32>
    %85 = vector.broadcast %81 : vector<32x1xf32> to vector<32x32xf32>
    %86 = vector.broadcast %84 : vector<1x32xf32> to vector<32x32xf32>
    %87 = arith.addf %85, %86 : vector<32x32xf32>
    %c1_47 = arith.constant 1 : index
    %c0_48 = arith.constant 0 : index
    %c0_49 = arith.constant 0 : index
    %88 = vector.load %arg2[%c1_47, %c0_48, %c0_49] : memref<4x32x32xf32, #tpu.memory_space<vmem>>, vector<1x32x32xf32>
    %89 = vector.shape_cast %88 : vector<1x32x32xf32> to vector<32x32xf32>
    %90 = arith.addf %87, %89 : vector<32x32xf32>
    %cst_50 = arith.constant 2.000000e-01 : f32
    %91 = vector.broadcast %cst_50 : f32 to vector<32x32xf32>
    %92 = arith.mulf %91, %90 : vector<32x32xf32>
    %93 = arith.maximumf %90, %92 : vector<32x32xf32>
    %cst_51 = arith.constant dense<0xFF800000> : vector<32xf32>
    %94 = vector.multi_reduction <maximumf>, %93, %cst_51 [1] : vector<32x32xf32> to vector<32xf32>
    %95 = vector.shape_cast %94 : vector<32xf32> to vector<32x1xf32>
    %96 = vector.broadcast %95 : vector<32x1xf32> to vector<32x32xf32>
    %97 = arith.subf %93, %96 : vector<32x32xf32>
    %98 = math.exp %97 : vector<32x32xf32>
    %cst_52 = arith.constant dense<0.000000e+00> : vector<32xf32>
    %99 = vector.multi_reduction <add>, %98, %cst_52 [1] : vector<32x32xf32> to vector<32xf32>
    %100 = vector.shape_cast %99 : vector<32xf32> to vector<32x1xf32>
    %101 = vector.broadcast %100 : vector<32x1xf32> to vector<32x32xf32>
    %102 = arith.divf %98, %101 : vector<32x32xf32>
    %103 = arith.truncf %102 : vector<32x32xf32> to vector<32x32xbf16>
    %104 = arith.truncf %80 : vector<32x128xf32> to vector<32x128xbf16>
    %cst_53 = arith.constant dense<0.000000e+00> : vector<32x128xf32>
    %105 = tpu.matmul %103, %104, %cst_53 {dimension_numbers = #tpu.dot_dimension_numbers<[1], [0], [0], [1], [0, 0, 1, 1], [], []>} : vector<32x32xbf16>, vector<32x128xbf16>, vector<32x128xf32> -> vector<32x128xf32>
    %106 = vector.extract_strided_slice %105 {offsets = [0, 0], sizes = [32, 32], strides = [1, 1]} : vector<32x128xf32> to vector<32x32xf32>
    %c1_54 = arith.constant 1 : index
    %c0_55 = arith.constant 0 : index
    %c0_56 = arith.constant 0 : index
    %107 = vector.load %arg5[%c1_54, %c0_55, %c0_56] : memref<4x1x32xf32, #tpu.memory_space<vmem>>, vector<1x1x32xf32>
    %108 = vector.shape_cast %107 : vector<1x1x32xf32> to vector<1x32xf32>
    %109 = vector.broadcast %108 : vector<1x32xf32> to vector<32x32xf32>
    %110 = arith.addf %106, %109 : vector<32x32xf32>
    %cst_57 = arith.constant dense<0.000000e+00> : vector<32xf32>
    %111 = vector.multi_reduction <add>, %110, %cst_57 [1] : vector<32x32xf32> to vector<32xf32>
    %112 = vector.shape_cast %111 : vector<32xf32> to vector<32x1xf32>
    %cst_58 = arith.constant 3.200000e+01 : f32
    %113 = vector.broadcast %cst_58 : f32 to vector<32x1xf32>
    %114 = arith.divf %112, %113 : vector<32x1xf32>
    %115 = vector.broadcast %114 : vector<32x1xf32> to vector<32x32xf32>
    %116 = arith.subf %110, %115 : vector<32x32xf32>
    %117 = arith.mulf %116, %116 : vector<32x32xf32>
    %cst_59 = arith.constant dense<0.000000e+00> : vector<32xf32>
    %118 = vector.multi_reduction <add>, %117, %cst_59 [1] : vector<32x32xf32> to vector<32xf32>
    %119 = vector.shape_cast %118 : vector<32xf32> to vector<32x1xf32>
    %cst_60 = arith.constant 3.200000e+01 : f32
    %120 = vector.broadcast %cst_60 : f32 to vector<32x1xf32>
    %121 = arith.divf %119, %120 : vector<32x1xf32>
    %122 = vector.broadcast %114 : vector<32x1xf32> to vector<32x32xf32>
    %123 = arith.subf %110, %122 : vector<32x32xf32>
    %cst_61 = arith.constant 9.99999974E-6 : f32
    %124 = vector.broadcast %cst_61 : f32 to vector<32x1xf32>
    %125 = arith.addf %121, %124 : vector<32x1xf32>
    %126 = math.rsqrt %125 : vector<32x1xf32>
    %127 = vector.broadcast %126 : vector<32x1xf32> to vector<32x32xf32>
    %128 = arith.mulf %123, %127 : vector<32x32xf32>
    %c1_62 = arith.constant 1 : index
    %c0_63 = arith.constant 0 : index
    %c0_64 = arith.constant 0 : index
    %129 = vector.load %arg6[%c1_62, %c0_63, %c0_64] : memref<4x1x32xf32, #tpu.memory_space<vmem>>, vector<1x1x32xf32>
    %130 = vector.shape_cast %129 : vector<1x1x32xf32> to vector<1x32xf32>
    %131 = vector.broadcast %130 : vector<1x32xf32> to vector<32x32xf32>
    %132 = arith.mulf %128, %131 : vector<32x32xf32>
    %c1_65 = arith.constant 1 : index
    %c0_66 = arith.constant 0 : index
    %c0_67 = arith.constant 0 : index
    %133 = vector.load %arg7[%c1_65, %c0_66, %c0_67] : memref<4x1x32xf32, #tpu.memory_space<vmem>>, vector<1x1x32xf32>
    %134 = vector.shape_cast %133 : vector<1x1x32xf32> to vector<1x32xf32>
    %135 = vector.broadcast %134 : vector<1x32xf32> to vector<32x32xf32>
    %136 = arith.addf %132, %135 : vector<32x32xf32>
    %cst_68 = arith.constant 5.000000e-01 : f32
    %137 = vector.broadcast %cst_68 : f32 to vector<32x32xf32>
    %138 = arith.mulf %137, %136 : vector<32x32xf32>
    %cst_69 = arith.constant 0.707106769 : f32
    %139 = vector.broadcast %cst_69 : f32 to vector<32x32xf32>
    %140 = arith.mulf %136, %139 : vector<32x32xf32>
    %141 = math.erf %140 : vector<32x32xf32>
    %cst_70 = arith.constant 1.000000e+00 : f32
    %142 = vector.broadcast %cst_70 : f32 to vector<32x32xf32>
    %143 = arith.addf %142, %141 : vector<32x32xf32>
    %144 = arith.mulf %138, %143 : vector<32x32xf32>
    %c2 = arith.constant 2 : index
    %c0_71 = arith.constant 0 : index
    %c0_72 = arith.constant 0 : index
    %145 = vector.load %arg1[%c2, %c0_71, %c0_72] : memref<4x32x32xbf16, #tpu.memory_space<vmem>>, vector<1x32x32xbf16>
    %146 = vector.shape_cast %145 : vector<1x32x32xbf16> to vector<32x32xbf16>
    %147 = arith.truncf %144 : vector<32x32xf32> to vector<32x32xbf16>
    %cst_73 = arith.constant dense<0.000000e+00> : vector<32x32xf32>
    %148 = tpu.matmul %146, %147, %cst_73 {dimension_numbers = #tpu.dot_dimension_numbers<[1], [0], [0], [1], [0, 0, 1, 1], [], []>} : vector<32x32xbf16>, vector<32x32xbf16>, vector<32x32xf32> -> vector<32x32xf32>
    %149 = arith.truncf %148 : vector<32x32xf32> to vector<32x32xbf16>
    %c2_74 = arith.constant 2 : index
    %c0_75 = arith.constant 0 : index
    %c0_76 = arith.constant 0 : index
    %150 = vector.load %arg3[%c2_74, %c0_75, %c0_76] : memref<4x32x128xbf16, #tpu.memory_space<vmem>>, vector<1x32x128xbf16>
    %151 = vector.shape_cast %150 : vector<1x32x128xbf16> to vector<32x128xbf16>
    %cst_77 = arith.constant dense<0.000000e+00> : vector<32x128xf32>
    %152 = tpu.matmul %149, %151, %cst_77 {dimension_numbers = #tpu.dot_dimension_numbers<[1], [0], [0], [1], [0, 0, 1, 1], [], []>} : vector<32x32xbf16>, vector<32x128xbf16>, vector<32x128xf32> -> vector<32x128xf32>
    %153 = vector.extract_strided_slice %152 {offsets = [0, 32], sizes = [32, 1], strides = [1, 1]} : vector<32x128xf32> to vector<32x1xf32>
    %c2_78 = arith.constant 2 : index
    %c0_79 = arith.constant 0 : index
    %c0_80 = arith.constant 0 : index
    %154 = vector.load %arg4[%c2_78, %c0_79, %c0_80] : memref<4x1x32xbf16, #tpu.memory_space<vmem>>, vector<1x1x32xbf16>
    %155 = vector.shape_cast %154 : vector<1x1x32xbf16> to vector<1x32xbf16>
    %cst_81 = arith.constant dense<0.000000e+00> : vector<1x32xf32>
    %156 = tpu.matmul %155, %149, %cst_81 {dimension_numbers = #tpu.dot_dimension_numbers<[1], [1], [0], [0], [0, 0, 1, 0], [], []>} : vector<1x32xbf16>, vector<32x32xbf16>, vector<1x32xf32> -> vector<1x32xf32>
    %157 = vector.broadcast %153 : vector<32x1xf32> to vector<32x32xf32>
    %158 = vector.broadcast %156 : vector<1x32xf32> to vector<32x32xf32>
    %159 = arith.addf %157, %158 : vector<32x32xf32>
    %c2_82 = arith.constant 2 : index
    %c0_83 = arith.constant 0 : index
    %c0_84 = arith.constant 0 : index
    %160 = vector.load %arg2[%c2_82, %c0_83, %c0_84] : memref<4x32x32xf32, #tpu.memory_space<vmem>>, vector<1x32x32xf32>
    %161 = vector.shape_cast %160 : vector<1x32x32xf32> to vector<32x32xf32>
    %162 = arith.addf %159, %161 : vector<32x32xf32>
    %cst_85 = arith.constant 2.000000e-01 : f32
    %163 = vector.broadcast %cst_85 : f32 to vector<32x32xf32>
    %164 = arith.mulf %163, %162 : vector<32x32xf32>
    %165 = arith.maximumf %162, %164 : vector<32x32xf32>
    %cst_86 = arith.constant dense<0xFF800000> : vector<32xf32>
    %166 = vector.multi_reduction <maximumf>, %165, %cst_86 [1] : vector<32x32xf32> to vector<32xf32>
    %167 = vector.shape_cast %166 : vector<32xf32> to vector<32x1xf32>
    %168 = vector.broadcast %167 : vector<32x1xf32> to vector<32x32xf32>
    %169 = arith.subf %165, %168 : vector<32x32xf32>
    %170 = math.exp %169 : vector<32x32xf32>
    %cst_87 = arith.constant dense<0.000000e+00> : vector<32xf32>
    %171 = vector.multi_reduction <add>, %170, %cst_87 [1] : vector<32x32xf32> to vector<32xf32>
    %172 = vector.shape_cast %171 : vector<32xf32> to vector<32x1xf32>
    %173 = vector.broadcast %172 : vector<32x1xf32> to vector<32x32xf32>
    %174 = arith.divf %170, %173 : vector<32x32xf32>
    %175 = arith.truncf %174 : vector<32x32xf32> to vector<32x32xbf16>
    %176 = arith.truncf %152 : vector<32x128xf32> to vector<32x128xbf16>
    %cst_88 = arith.constant dense<0.000000e+00> : vector<32x128xf32>
    %177 = tpu.matmul %175, %176, %cst_88 {dimension_numbers = #tpu.dot_dimension_numbers<[1], [0], [0], [1], [0, 0, 1, 1], [], []>} : vector<32x32xbf16>, vector<32x128xbf16>, vector<32x128xf32> -> vector<32x128xf32>
    %178 = vector.extract_strided_slice %177 {offsets = [0, 0], sizes = [32, 32], strides = [1, 1]} : vector<32x128xf32> to vector<32x32xf32>
    %c2_89 = arith.constant 2 : index
    %c0_90 = arith.constant 0 : index
    %c0_91 = arith.constant 0 : index
    %179 = vector.load %arg5[%c2_89, %c0_90, %c0_91] : memref<4x1x32xf32, #tpu.memory_space<vmem>>, vector<1x1x32xf32>
    %180 = vector.shape_cast %179 : vector<1x1x32xf32> to vector<1x32xf32>
    %181 = vector.broadcast %180 : vector<1x32xf32> to vector<32x32xf32>
    %182 = arith.addf %178, %181 : vector<32x32xf32>
    %cst_92 = arith.constant dense<0.000000e+00> : vector<32xf32>
    %183 = vector.multi_reduction <add>, %182, %cst_92 [1] : vector<32x32xf32> to vector<32xf32>
    %184 = vector.shape_cast %183 : vector<32xf32> to vector<32x1xf32>
    %cst_93 = arith.constant 3.200000e+01 : f32
    %185 = vector.broadcast %cst_93 : f32 to vector<32x1xf32>
    %186 = arith.divf %184, %185 : vector<32x1xf32>
    %187 = vector.broadcast %186 : vector<32x1xf32> to vector<32x32xf32>
    %188 = arith.subf %182, %187 : vector<32x32xf32>
    %189 = arith.mulf %188, %188 : vector<32x32xf32>
    %cst_94 = arith.constant dense<0.000000e+00> : vector<32xf32>
    %190 = vector.multi_reduction <add>, %189, %cst_94 [1] : vector<32x32xf32> to vector<32xf32>
    %191 = vector.shape_cast %190 : vector<32xf32> to vector<32x1xf32>
    %cst_95 = arith.constant 3.200000e+01 : f32
    %192 = vector.broadcast %cst_95 : f32 to vector<32x1xf32>
    %193 = arith.divf %191, %192 : vector<32x1xf32>
    %194 = vector.broadcast %186 : vector<32x1xf32> to vector<32x32xf32>
    %195 = arith.subf %182, %194 : vector<32x32xf32>
    %cst_96 = arith.constant 9.99999974E-6 : f32
    %196 = vector.broadcast %cst_96 : f32 to vector<32x1xf32>
    %197 = arith.addf %193, %196 : vector<32x1xf32>
    %198 = math.rsqrt %197 : vector<32x1xf32>
    %199 = vector.broadcast %198 : vector<32x1xf32> to vector<32x32xf32>
    %200 = arith.mulf %195, %199 : vector<32x32xf32>
    %c2_97 = arith.constant 2 : index
    %c0_98 = arith.constant 0 : index
    %c0_99 = arith.constant 0 : index
    %201 = vector.load %arg6[%c2_97, %c0_98, %c0_99] : memref<4x1x32xf32, #tpu.memory_space<vmem>>, vector<1x1x32xf32>
    %202 = vector.shape_cast %201 : vector<1x1x32xf32> to vector<1x32xf32>
    %203 = vector.broadcast %202 : vector<1x32xf32> to vector<32x32xf32>
    %204 = arith.mulf %200, %203 : vector<32x32xf32>
    %c2_100 = arith.constant 2 : index
    %c0_101 = arith.constant 0 : index
    %c0_102 = arith.constant 0 : index
    %205 = vector.load %arg7[%c2_100, %c0_101, %c0_102] : memref<4x1x32xf32, #tpu.memory_space<vmem>>, vector<1x1x32xf32>
    %206 = vector.shape_cast %205 : vector<1x1x32xf32> to vector<1x32xf32>
    %207 = vector.broadcast %206 : vector<1x32xf32> to vector<32x32xf32>
    %208 = arith.addf %204, %207 : vector<32x32xf32>
    %cst_103 = arith.constant 5.000000e-01 : f32
    %209 = vector.broadcast %cst_103 : f32 to vector<32x32xf32>
    %210 = arith.mulf %209, %208 : vector<32x32xf32>
    %cst_104 = arith.constant 0.707106769 : f32
    %211 = vector.broadcast %cst_104 : f32 to vector<32x32xf32>
    %212 = arith.mulf %208, %211 : vector<32x32xf32>
    %213 = math.erf %212 : vector<32x32xf32>
    %cst_105 = arith.constant 1.000000e+00 : f32
    %214 = vector.broadcast %cst_105 : f32 to vector<32x32xf32>
    %215 = arith.addf %214, %213 : vector<32x32xf32>
    %216 = arith.mulf %210, %215 : vector<32x32xf32>
    %c3 = arith.constant 3 : index
    %c0_106 = arith.constant 0 : index
    %c0_107 = arith.constant 0 : index
    %217 = vector.load %arg1[%c3, %c0_106, %c0_107] : memref<4x32x32xbf16, #tpu.memory_space<vmem>>, vector<1x32x32xbf16>
    %218 = vector.shape_cast %217 : vector<1x32x32xbf16> to vector<32x32xbf16>
    %219 = arith.truncf %216 : vector<32x32xf32> to vector<32x32xbf16>
    %cst_108 = arith.constant dense<0.000000e+00> : vector<32x32xf32>
    %220 = tpu.matmul %218, %219, %cst_108 {dimension_numbers = #tpu.dot_dimension_numbers<[1], [0], [0], [1], [0, 0, 1, 1], [], []>} : vector<32x32xbf16>, vector<32x32xbf16>, vector<32x32xf32> -> vector<32x32xf32>
    %221 = arith.truncf %220 : vector<32x32xf32> to vector<32x32xbf16>
    %c3_109 = arith.constant 3 : index
    %c0_110 = arith.constant 0 : index
    %c0_111 = arith.constant 0 : index
    %222 = vector.load %arg3[%c3_109, %c0_110, %c0_111] : memref<4x32x128xbf16, #tpu.memory_space<vmem>>, vector<1x32x128xbf16>
    %223 = vector.shape_cast %222 : vector<1x32x128xbf16> to vector<32x128xbf16>
    %cst_112 = arith.constant dense<0.000000e+00> : vector<32x128xf32>
    %224 = tpu.matmul %221, %223, %cst_112 {dimension_numbers = #tpu.dot_dimension_numbers<[1], [0], [0], [1], [0, 0, 1, 1], [], []>} : vector<32x32xbf16>, vector<32x128xbf16>, vector<32x128xf32> -> vector<32x128xf32>
    %225 = vector.extract_strided_slice %224 {offsets = [0, 32], sizes = [32, 1], strides = [1, 1]} : vector<32x128xf32> to vector<32x1xf32>
    %c3_113 = arith.constant 3 : index
    %c0_114 = arith.constant 0 : index
    %c0_115 = arith.constant 0 : index
    %226 = vector.load %arg4[%c3_113, %c0_114, %c0_115] : memref<4x1x32xbf16, #tpu.memory_space<vmem>>, vector<1x1x32xbf16>
    %227 = vector.shape_cast %226 : vector<1x1x32xbf16> to vector<1x32xbf16>
    %cst_116 = arith.constant dense<0.000000e+00> : vector<1x32xf32>
    %228 = tpu.matmul %227, %221, %cst_116 {dimension_numbers = #tpu.dot_dimension_numbers<[1], [1], [0], [0], [0, 0, 1, 0], [], []>} : vector<1x32xbf16>, vector<32x32xbf16>, vector<1x32xf32> -> vector<1x32xf32>
    %229 = vector.broadcast %225 : vector<32x1xf32> to vector<32x32xf32>
    %230 = vector.broadcast %228 : vector<1x32xf32> to vector<32x32xf32>
    %231 = arith.addf %229, %230 : vector<32x32xf32>
    %c3_117 = arith.constant 3 : index
    %c0_118 = arith.constant 0 : index
    %c0_119 = arith.constant 0 : index
    %232 = vector.load %arg2[%c3_117, %c0_118, %c0_119] : memref<4x32x32xf32, #tpu.memory_space<vmem>>, vector<1x32x32xf32>
    %233 = vector.shape_cast %232 : vector<1x32x32xf32> to vector<32x32xf32>
    %234 = arith.addf %231, %233 : vector<32x32xf32>
    %cst_120 = arith.constant 2.000000e-01 : f32
    %235 = vector.broadcast %cst_120 : f32 to vector<32x32xf32>
    %236 = arith.mulf %235, %234 : vector<32x32xf32>
    %237 = arith.maximumf %234, %236 : vector<32x32xf32>
    %cst_121 = arith.constant dense<0xFF800000> : vector<32xf32>
    %238 = vector.multi_reduction <maximumf>, %237, %cst_121 [1] : vector<32x32xf32> to vector<32xf32>
    %239 = vector.shape_cast %238 : vector<32xf32> to vector<32x1xf32>
    %240 = vector.broadcast %239 : vector<32x1xf32> to vector<32x32xf32>
    %241 = arith.subf %237, %240 : vector<32x32xf32>
    %242 = math.exp %241 : vector<32x32xf32>
    %cst_122 = arith.constant dense<0.000000e+00> : vector<32xf32>
    %243 = vector.multi_reduction <add>, %242, %cst_122 [1] : vector<32x32xf32> to vector<32xf32>
    %244 = vector.shape_cast %243 : vector<32xf32> to vector<32x1xf32>
    %245 = vector.broadcast %244 : vector<32x1xf32> to vector<32x32xf32>
    %246 = arith.divf %242, %245 : vector<32x32xf32>
    %247 = arith.truncf %246 : vector<32x32xf32> to vector<32x32xbf16>
    %248 = arith.truncf %224 : vector<32x128xf32> to vector<32x128xbf16>
    %cst_123 = arith.constant dense<0.000000e+00> : vector<32x128xf32>
    %249 = tpu.matmul %247, %248, %cst_123 {dimension_numbers = #tpu.dot_dimension_numbers<[1], [0], [0], [1], [0, 0, 1, 1], [], []>} : vector<32x32xbf16>, vector<32x128xbf16>, vector<32x128xf32> -> vector<32x128xf32>
    %250 = vector.extract_strided_slice %249 {offsets = [0, 0], sizes = [32, 32], strides = [1, 1]} : vector<32x128xf32> to vector<32x32xf32>
    %c3_124 = arith.constant 3 : index
    %c0_125 = arith.constant 0 : index
    %c0_126 = arith.constant 0 : index
    %251 = vector.load %arg5[%c3_124, %c0_125, %c0_126] : memref<4x1x32xf32, #tpu.memory_space<vmem>>, vector<1x1x32xf32>
    %252 = vector.shape_cast %251 : vector<1x1x32xf32> to vector<1x32xf32>
    %253 = vector.broadcast %252 : vector<1x32xf32> to vector<32x32xf32>
    %254 = arith.addf %250, %253 : vector<32x32xf32>
    %cst_127 = arith.constant dense<0.000000e+00> : vector<32xf32>
    %255 = vector.multi_reduction <add>, %254, %cst_127 [1] : vector<32x32xf32> to vector<32xf32>
    %256 = vector.shape_cast %255 : vector<32xf32> to vector<32x1xf32>
    %cst_128 = arith.constant 3.200000e+01 : f32
    %257 = vector.broadcast %cst_128 : f32 to vector<32x1xf32>
    %258 = arith.divf %256, %257 : vector<32x1xf32>
    %259 = vector.broadcast %258 : vector<32x1xf32> to vector<32x32xf32>
    %260 = arith.subf %254, %259 : vector<32x32xf32>
    %261 = arith.mulf %260, %260 : vector<32x32xf32>
    %cst_129 = arith.constant dense<0.000000e+00> : vector<32xf32>
    %262 = vector.multi_reduction <add>, %261, %cst_129 [1] : vector<32x32xf32> to vector<32xf32>
    %263 = vector.shape_cast %262 : vector<32xf32> to vector<32x1xf32>
    %cst_130 = arith.constant 3.200000e+01 : f32
    %264 = vector.broadcast %cst_130 : f32 to vector<32x1xf32>
    %265 = arith.divf %263, %264 : vector<32x1xf32>
    %266 = vector.broadcast %258 : vector<32x1xf32> to vector<32x32xf32>
    %267 = arith.subf %254, %266 : vector<32x32xf32>
    %cst_131 = arith.constant 9.99999974E-6 : f32
    %268 = vector.broadcast %cst_131 : f32 to vector<32x1xf32>
    %269 = arith.addf %265, %268 : vector<32x1xf32>
    %270 = math.rsqrt %269 : vector<32x1xf32>
    %271 = vector.broadcast %270 : vector<32x1xf32> to vector<32x32xf32>
    %272 = arith.mulf %267, %271 : vector<32x32xf32>
    %c3_132 = arith.constant 3 : index
    %c0_133 = arith.constant 0 : index
    %c0_134 = arith.constant 0 : index
    %273 = vector.load %arg6[%c3_132, %c0_133, %c0_134] : memref<4x1x32xf32, #tpu.memory_space<vmem>>, vector<1x1x32xf32>
    %274 = vector.shape_cast %273 : vector<1x1x32xf32> to vector<1x32xf32>
    %275 = vector.broadcast %274 : vector<1x32xf32> to vector<32x32xf32>
    %276 = arith.mulf %272, %275 : vector<32x32xf32>
    %c3_135 = arith.constant 3 : index
    %c0_136 = arith.constant 0 : index
    %c0_137 = arith.constant 0 : index
    %277 = vector.load %arg7[%c3_135, %c0_136, %c0_137] : memref<4x1x32xf32, #tpu.memory_space<vmem>>, vector<1x1x32xf32>
    %278 = vector.shape_cast %277 : vector<1x1x32xf32> to vector<1x32xf32>
    %279 = vector.broadcast %278 : vector<1x32xf32> to vector<32x32xf32>
    %280 = arith.addf %276, %279 : vector<32x32xf32>
    %cst_138 = arith.constant 5.000000e-01 : f32
    %281 = vector.broadcast %cst_138 : f32 to vector<32x32xf32>
    %282 = arith.mulf %281, %280 : vector<32x32xf32>
    %cst_139 = arith.constant 0.707106769 : f32
    %283 = vector.broadcast %cst_139 : f32 to vector<32x32xf32>
    %284 = arith.mulf %280, %283 : vector<32x32xf32>
    %285 = math.erf %284 : vector<32x32xf32>
    %cst_140 = arith.constant 1.000000e+00 : f32
    %286 = vector.broadcast %cst_140 : f32 to vector<32x32xf32>
    %287 = arith.addf %286, %285 : vector<32x32xf32>
    %288 = arith.mulf %282, %287 : vector<32x32xf32>
    %c0_141 = arith.constant 0 : index
    %c0_142 = arith.constant 0 : index
    %289 = vector.load %arg8[%c0_141, %c0_142] : memref<32x32xf32, #tpu.memory_space<vmem>>, vector<32x32xf32>
    tpu.vector_store %arg8[%c0_141, %c0_142], %288 {strides = array<i32>} : memref<32x32xf32, #tpu.memory_space<vmem>>, vector<32x32xf32>,
    return
  }
}

</mosaic_0001>

<llo_original>
// kernel: forward.1
$region0: #{forward.1}
  #allocation0 [shape = 'u32[]', space=smem, size = 0x4, offset = 0x4, fixed_abs, tag = 'smem constant byte address 0x4 - core index']
  #allocation1 [shape = 'u32[144,128]{1,0:T(1,128)}', space=vmem, size = 0x12000, scoped, tag = 'internal scratch']
  %s0 = inlined_call_operand.vmem [shape: f32[32,32], index: 0, kind: input, shape index: {}]
  %s1 = inlined_call_operand.vmem [shape: bf16[4,32,32], index: 1, kind: input, shape index: {}]
  %s2 = inlined_call_operand.hbm [shape: f32[4,32,32], index: 2, kind: input, shape index: {}]
  %s3 = inlined_call_operand.hbm [shape: bf16[4,32,128], index: 3, kind: input, shape index: {}]
  %s4 = inlined_call_operand.vmem [shape: bf16[4,1,32], index: 4, kind: input, shape index: {}]
  %s5 = inlined_call_operand.hbm [shape: f32[4,1,32], index: 5, kind: input, shape index: {}]
  %s6 = inlined_call_operand.hbm [shape: f32[4,1,32], index: 6, kind: input, shape index: {}]
  %s7 = inlined_call_operand.hbm [shape: f32[4,1,32], index: 7, kind: input, shape index: {}]
  %s8 = inlined_call_operand.hbm [shape: f32[32,32], index: 8, kind: output, shape index: {}]
  %s9 = sld [smem:[#allocation0]]
  $region62: #{forward.1} parent=0
    _
  %s11 = ssub.s32 1, %s9
  %s12 = scalar_select 0, %s11, %s9
  $region1: #{forward.1} parent=0
    #allocation2 [shape = 'u8[65536]{0}', space=vmem, size = 0x10000, scoped, tag = 'input window, operand 2, single buffered']
    #allocation3 [shape = 's32[1]{0}', space=sflag, size = 0x4, scoped, tag = 'scoped memory for forward.1']
    #allocation4 [shape = 's32[1]{0}', space=sflag, size = 0x4, scoped, tag = 'scoped memory for forward.1']
    #allocation5 [shape = 'u8[32768]{0}', space=vmem, size = 0x8000, scoped, tag = 'input window, operand 3, single buffered']
    #allocation6 [shape = 's32[1]{0}', space=sflag, size = 0x4, scoped, tag = 'scoped memory for forward.1']
    #allocation7 [shape = 'u8[2048]{0}', space=vmem, size = 0x800, scoped, tag = 'input window, operand 5, single buffered']
    #allocation8 [shape = 'u8[2048]{0}', space=vmem, size = 0x800, scoped, tag = 'input window, operand 6, single buffered']
    #allocation9 [shape = 's32[1]{0}', space=sflag, size = 0x4, scoped, tag = 'scoped memory for forward.1']
    #allocation10 [shape = 'u8[2048]{0}', space=vmem, size = 0x800, scoped, tag = 'input window, operand 7, single buffered']
    #allocation11 [shape = 'u8[16384]{0}', space=vmem, size = 0x4000, scoped, tag = 'output window, operand 0, single buffered']
    %13 = vsyncpa [#allocation3], 0
    %14 = vsyncpa [#allocation6], 0
    %15 = vsyncpa [#allocation9], 0
    %16 = vsyncpa [#allocation4], 0
    // Predicated region
    $region2: #{forward.1} parent=1 // pred_check
      _
    $region3: #{forward.1} parent=1 // pred_check_branch
      %18 = sbr.rel (0) target = $region5
    $region4: #{forward.1} parent=1 // pred_region
      _
    $region5: #{forward.1} parent=1 // pred_fallthru
      _
    // Predicated region
    $region6: #{forward.1} parent=1 // pred_check
      _
    $region7: #{forward.1} parent=1 // pred_check_branch
      %20 = sbr.rel (0) target = $region9
    $region8: #{forward.1} parent=1 // pred_region
      _
    $region9: #{forward.1} parent=1 // pred_fallthru
      _
    // Predicated region
    $region10: #{forward.1} parent=1 // pred_check
      _
    $region11: #{forward.1} parent=1 // pred_check_branch
      %22 = sbr.rel (0) target = $region13
    $region12: #{forward.1} parent=1 // pred_region
      %s24 = ssub.s32 2048, 2048
      %25 = vsyncadd [#allocation3], %s24
      %s26 = sshll.u32 [#allocation2], 4
      %s27 = int_to_ptr.vmem [resolvable:$true] %s26
      %32 = dma.hbm_to_vmem [thread:$0]  %s2, 2048, %s27, [#allocation3], 128, 128, 8
    $region13: #{forward.1} parent=1 // pred_fallthru
      _
    // Predicated region
    $region14: #{forward.1} parent=1 // pred_check
      _
    $region15: #{forward.1} parent=1 // pred_check_branch
      %34 = sbr.rel (0) target = $region17
    $region16: #{forward.1} parent=1 // pred_region
      %s36 = ssub.s32 1024, 1024
      %37 = vsyncadd [#allocation6], %s36
      %s38 = sshll.u32 [#allocation5], 4
      %s39 = int_to_ptr.vmem [resolvable:$true] %s38
      %44 = dma.hbm_to_vmem [thread:$0]  %s3, 1024, %s39, [#allocation6], 64, 64, 4
    $region17: #{forward.1} parent=1 // pred_fallthru
      _
    // Predicated region
    $region18: #{forward.1} parent=1 // pred_check
      _
    $region19: #{forward.1} parent=1 // pred_check_branch
      %46 = sbr.rel (0) target = $region21
    $region20: #{forward.1} parent=1 // pred_region
      _
    $region21: #{forward.1} parent=1 // pred_fallthru
      _
    // Predicated region
    $region22: #{forward.1} parent=1 // pred_check
      _
    $region23: #{forward.1} parent=1 // pred_check_branch
      %48 = sbr.rel (0) target = $region25
    $region24: #{forward.1} parent=1 // pred_region
      %s50 = ssub.s32 64, 64
      %51 = vsyncadd [#allocation6], %s50
      %s52 = sshll.u32 [#allocation7], 4
      %s53 = int_to_ptr.vmem [resolvable:$true] %s52
      %58 = dma.hbm_to_vmem [thread:$0]  %s5, 64, %s53, [#allocation6], 16, 16, 1
    $region25: #{forward.1} parent=1 // pred_fallthru
      _
    // Predicated region
    $region26: #{forward.1} parent=1 // pred_check
      _
    $region27: #{forward.1} parent=1 // pred_check_branch
      %60 = sbr.rel (0) target = $region29
    $region28: #{forward.1} parent=1 // pred_region
      %s62 = ssub.s32 64, 64
      %63 = vsyncadd [#allocation9], %s62
      %s64 = sshll.u32 [#allocation8], 4
      %s65 = int_to_ptr.vmem [resolvable:$true] %s64
      %70 = dma.hbm_to_vmem [thread:$0]  %s6, 64, %s65, [#allocation9], 16, 16, 1
    $region29: #{forward.1} parent=1 // pred_fallthru
      _
    // Predicated region
    $region30: #{forward.1} parent=1 // pred_check
      _
    $region31: #{forward.1} parent=1 // pred_check_branch
      %72 = sbr.rel (0) target = $region33
    $region32: #{forward.1} parent=1 // pred_region
      %s74 = ssub.s32 64, 64
      %75 = vsyncadd [#allocation9], %s74
      %s76 = sshll.u32 [#allocation10], 4
      %s77 = int_to_ptr.vmem [resolvable:$true] %s76
      %82 = dma.hbm_to_vmem [thread:$0]  %s7, 64, %s77, [#allocation9], 16, 16, 1
    $region33: #{forward.1} parent=1 // pred_fallthru
      _
    // Predicated region
    $region34: #{forward.1} parent=1 // pred_check
      _
    $region35: #{forward.1} parent=1 // pred_check_branch
      %84 = sbr.rel (0) target = $region37
    $region36: #{forward.1} parent=1 // pred_region
      %85 = dma.done [#allocation3], 2048
    $region37: #{forward.1} parent=1 // pred_fallthru
      _
    // Predicated region
    $region38: #{forward.1} parent=1 // pred_check
      _
    $region39: #{forward.1} parent=1 // pred_check_branch
      %87 = sbr.rel (0) target = $region41
    $region40: #{forward.1} parent=1 // pred_region
      %88 = dma.done [#allocation6], 1024
    $region41: #{forward.1} parent=1 // pred_fallthru
      _
    // Predicated region
    $region42: #{forward.1} parent=1 // pred_check
      _
    $region43: #{forward.1} parent=1 // pred_check_branch
      %90 = sbr.rel (0) target = $region45
    $region44: #{forward.1} parent=1 // pred_region
      %91 = dma.done [#allocation6], 64
    $region45: #{forward.1} parent=1 // pred_fallthru
      _
    // Predicated region
    $region46: #{forward.1} parent=1 // pred_check
      _
    $region47: #{forward.1} parent=1 // pred_check_branch
      %93 = sbr.rel (0) target = $region49
    $region48: #{forward.1} parent=1 // pred_region
      %94 = dma.done [#allocation9], 64
    $region49: #{forward.1} parent=1 // pred_fallthru
      _
    // Predicated region
    $region50: #{forward.1} parent=1 // pred_check
      _
    $region51: #{forward.1} parent=1 // pred_check_branch
      %96 = sbr.rel (0) target = $region53
    $region52: #{forward.1} parent=1 // pred_region
      %97 = dma.done [#allocation9], 64
    $region53: #{forward.1} parent=1 // pred_fallthru
      _
    %v99 = vld [vmem:[%s0] sm:$0xff]
    %v100 = vld [vmem:[%s0 + $0x8] sm:$0xff]
    %v101 = vld [vmem:[%s0 + $0x10] sm:$0xff]
    %v102 = vld [vmem:[%s0 + $0x18] sm:$0xff]
    %v103 = vld [vmem:[%s1] sm:$0xf]
    %v104 = vld [vmem:[%s1 + $0x4] sm:$0xf]
    %v105 = vld [vmem:[%s1 + $0x8] sm:$0xf]
    %v106 = vld [vmem:[%s1 + $0xc] sm:$0xf]
    %v107 = vpack.c.bf16 %v100, %v99
    %v108 = vpack.c.bf16 %v102, %v101
    %v113 = vunpack.c.l.b16 %v103
    %v114 = vunpack.c.l.b16 %v104
    %v115 = vunpack.c.l.b16 %v105
    %v116 = vunpack.c.l.b16 %v106
    %v117 = vpack.c.b16 %v114, %v113
    %v118 = vpack.c.b16 %v116, %v115
    %vm119 = vcmask 261120
    %v121 = vsel %vm119, %v117, 0
    %v124 = vsel %vm119, %v118, 0
    %126 = vmatprep.subr.bf16.mxu0 0
    %127 = vmatpush1.bf16.msra.mxu0 %v107
    %128 = vmatprep.subr.bf16.mxu0 0
    %129 = vmatpush1.bf16.msra.mxu0 %v108
    %130 = vmatprep.subr.bf16.mxu0 0
    %131 = vmatpush1.bf16.msra.mxu0 0
    %132 = vmatprep.subr.bf16.mxu0 0
    %133 = vmatpush1.bf16.msra.mxu0 0
    %134 = vmatprep.subr.bf16.mxu0 0
    %135 = vmatpush1.bf16.msra.mxu0 0
    %136 = vmatprep.subr.bf16.mxu0 0
    %137 = vmatpush1.bf16.msra.mxu0 0
    %138 = vmatprep.subr.bf16.mxu0 0
    %139 = vmatpush1.bf16.msra.mxu0 0
    %140 = vmatprep.subr.bf16.mxu0 0
    %141 = vmatpush1.bf16.msra.mxu0 0
    %142 = vmatprep.subr.bf16.mxu0 0
    %143 = vmatpush1.bf16.msra.mxu0 0
    %144 = vmatprep.subr.bf16.mxu0 0
    %145 = vmatpush1.bf16.msra.mxu0 0
    %146 = vmatprep.subr.bf16.mxu0 0
    %147 = vmatpush1.bf16.msra.mxu0 0
    %148 = vmatprep.subr.bf16.mxu0 0
    %149 = vmatpush1.bf16.msra.mxu0 0
    %150 = vmatprep.subr.bf16.mxu0 0
    %151 = vmatpush1.bf16.msra.mxu0 0
    %152 = vmatprep.subr.bf16.mxu0 0
    %153 = vmatpush1.bf16.msra.mxu0 0
    %154 = vmatprep.subr.bf16.mxu0 0
    %155 = vmatpush1.bf16.msra.mxu0 0
    %156 = vmatprep.subr.bf16.mxu0 0
    %157 = vmatpush1.bf16.msra.mxu0 0
    %158 = vmatprep.mubr.bf16.mxu0 0
    %159 = vmatmul.mubr.bf16.gmra.mrb[0].mxu0 %v121
    %v160 = vpop.f32.mrb[0].mxu0
    %v161 = vadd.f32 0.0, %v160
    %v162 = vpop.f32.mrb[0].mxu0
    %v163 = vpop.f32.mrb[0].mxu0
    %v164 = vadd.f32 0.0, %v163
    %v165 = vpop.f32.mrb[0].mxu0
    %166 = vmatprep.mubr.bf16.mxu0 0
    %167 = vmatmul.mubr.bf16.gmra.mrb[0].mxu0 %v124
    %v168 = vpop.f32.mrb[0].mxu0
    %v169 = vadd.f32 0.0, %v168
    %v170 = vpop.f32.mrb[0].mxu0
    %v171 = vpop.f32.mrb[0].mxu0
    %v172 = vadd.f32 0.0, %v171
    %v173 = vpop.f32.mrb[0].mxu0
    %174 = vdwg.mxu0
    %v175 = vpack.c.bf16 %v164, %v161
    %v176 = vpack.c.bf16 %v172, %v169
    %v177 = vld [vmem:[#allocation5] sm:$0xf]
    %v178 = vld [vmem:[#allocation5 + $0x4] sm:$0xf]
    %v179 = vld [vmem:[#allocation5 + $0x8] sm:$0xf]
    %v180 = vld [vmem:[#allocation5 + $0xc] sm:$0xf]
    %v185 = vunpack.c.l.b16 %v177
    %v186 = vunpack.c.l.b16 %v178
    %v187 = vunpack.c.l.b16 %v179
    %v188 = vunpack.c.l.b16 %v180
    %v189 = vpack.c.b16 %v186, %v185
    %v190 = vpack.c.b16 %v188, %v187
    %v194 = vsel %vm119, %v175, 0
    %v197 = vsel %vm119, %v176, 0
    %199 = vmatprep.subr.bf16.mxu0 0
    %200 = vmatpush1.bf16.msra.mxu0 %v189
    %201 = vmatprep.subr.bf16.mxu0 0
    %202 = vmatpush1.bf16.msra.mxu0 %v190
    %203 = vmatprep.subr.bf16.mxu0 0
    %204 = vmatpush1.bf16.msra.mxu0 0
    %205 = vmatprep.subr.bf16.mxu0 0
    %206 = vmatpush1.bf16.msra.mxu0 0
    %207 = vmatprep.subr.bf16.mxu0 0
    %208 = vmatpush1.bf16.msra.mxu0 0
    %209 = vmatprep.subr.bf16.mxu0 0
    %210 = vmatpush1.bf16.msra.mxu0 0
    %211 = vmatprep.subr.bf16.mxu0 0
    %212 = vmatpush1.bf16.msra.mxu0 0
    %213 = vmatprep.subr.bf16.mxu0 0
    %214 = vmatpush1.bf16.msra.mxu0 0
    %215 = vmatprep.subr.bf16.mxu0 0
    %216 = vmatpush1.bf16.msra.mxu0 0
    %217 = vmatprep.subr.bf16.mxu0 0
    %218 = vmatpush1.bf16.msra.mxu0 0
    %219 = vmatprep.subr.bf16.mxu0 0
    %220 = vmatpush1.bf16.msra.mxu0 0
    %221 = vmatprep.subr.bf16.mxu0 0
    %222 = vmatpush1.bf16.msra.mxu0 0
    %223 = vmatprep.subr.bf16.mxu0 0
    %224 = vmatpush1.bf16.msra.mxu0 0
    %225 = vmatprep.subr.bf16.mxu0 0
    %226 = vmatpush1.bf16.msra.mxu0 0
    %227 = vmatprep.subr.bf16.mxu0 0
    %228 = vmatpush1.bf16.msra.mxu0 0
    %229 = vmatprep.subr.bf16.mxu0 0
    %230 = vmatpush1.bf16.msra.mxu0 0
    %231 = vmatprep.mubr.bf16.mxu0 0
    %232 = vmatmul.mubr.bf16.gmra.mrb[0].mxu0 %v194
    %v233 = vpop.f32.mrb[0].mxu0
    %v234 = vadd.f32 0.0, %v233
    %v235 = vpop.f32.mrb[0].mxu0
    %v236 = vpop.f32.mrb[0].mxu0
    %v237 = vadd.f32 0.0, %v236
    %v238 = vpop.f32.mrb[0].mxu0
    %239 = vmatprep.mubr.bf16.mxu0 0
    %240 = vmatmul.mubr.bf16.gmra.mrb[0].mxu0 %v197
    %v241 = vpop.f32.mrb[0].mxu0
    %v242 = vadd.f32 0.0, %v241
    %v243 = vpop.f32.mrb[0].mxu0
    %v244 = vpop.f32.mrb[0].mxu0
    %v245 = vadd.f32 0.0, %v244
    %v246 = vpop.f32.mrb[0].mxu0
    %247 = vdwg.mxu0
    %v248 = vld [vmem:[%s4] sm:$0x1]
    %v250 = vsel %vm119, %v248, 0
    %252 = vmatprep.subr.bf16.mxu0 0
    %253 = vmatpush1.bf16.xpose.msra.mxu0 %v194
    %254 = vmatprep.subr.bf16.mxu0 0
    %255 = vmatpush1.bf16.xpose.msra.mxu0 %v197
    %256 = vmatprep.subr.bf16.mxu0 0
    %257 = vmatpush1.bf16.xpose.msra.mxu0 0
    %258 = vmatprep.subr.bf16.mxu0 0
    %259 = vmatpush1.bf16.xpose.msra.mxu0 0
    %260 = vmatprep.subr.bf16.mxu0 0
    %261 = vmatpush1.bf16.xpose.msra.mxu0 0
    %262 = vmatprep.subr.bf16.mxu0 0
    %263 = vmatpush1.bf16.xpose.msra.mxu0 0
    %264 = vmatprep.subr.bf16.mxu0 0
    %265 = vmatpush1.bf16.xpose.msra.mxu0 0
    %266 = vmatprep.subr.bf16.mxu0 0
    %267 = vmatpush1.bf16.xpose.msra.mxu0 0
    %268 = vmatprep.subr.bf16.mxu0 0
    %269 = vmatpush1.bf16.xpose.msra.mxu0 0
    %270 = vmatprep.subr.bf16.mxu0 0
    %271 = vmatpush1.bf16.xpose.msra.mxu0 0
    %272 = vmatprep.subr.bf16.mxu0 0
    %273 = vmatpush1.bf16.xpose.msra.mxu0 0
    %274 = vmatprep.subr.bf16.mxu0 0
    %275 = vmatpush1.bf16.xpose.msra.mxu0 0
    %276 = vmatprep.subr.bf16.mxu0 0
    %277 = vmatpush1.bf16.xpose.msra.mxu0 0
    %278 = vmatprep.subr.bf16.mxu0 0
    %279 = vmatpush1.bf16.xpose.msra.mxu0 0
    %280 = vmatprep.subr.bf16.mxu0 0
    %281 = vmatpush1.bf16.xpose.msra.mxu0 0
    %282 = vmatprep.subr.bf16.mxu0 0
    %283 = vmatpush1.bf16.xpose.msra.mxu0 0
    %284 = vmatprep.mubr.bf16.mxu0 0
    %285 = vmatmul.mubr.bf16.gmra.mrb[0].mxu0 %v250
    %v286 = vpop.f32.mrb[0].mxu0
    %v287 = vadd.f32 0.0, %v286
    %v288 = vpop.f32.mrb[0].mxu0
    %v289 = vpop.f32.mrb[0].mxu0
    %v290 = vpop.f32.mrb[0].mxu0
    %291 = vdwg.mxu0
    %293 = vset.pattern.permute.xlu0 32
    %294 = vperm.xlu0 %293, %v234
    %v295 = vpop.permute.xlu0 %294
    %298 = vset.pattern.permute.xlu0 32
    %299 = vperm.xlu0 %298, %v237
    %v300 = vpop.permute.xlu0 %299
    %303 = vset.pattern.permute.xlu0 32
    %304 = vperm.xlu0 %303, %v242
    %v305 = vpop.permute.xlu0 %304
    %308 = vset.pattern.permute.xlu0 32
    %309 = vperm.xlu0 %308, %v245
    %v310 = vpop.permute.xlu0 %309
    %v312 = vlaneseq
    %v313 = vshrl.u32 %v312, 7
    %v314 = vsub.s32 0, %v313
    %v315 = vrot.slane %v287, %v314
    %v316 = vadd.f32 %v295, %v315
    %v317 = vadd.f32 %v300, %v315
    %v318 = vadd.f32 %v305, %v315
    %v319 = vadd.f32 %v310, %v315
    %v320 = vld [vmem:[#allocation2] sm:$0xff]
    %v321 = vld [vmem:[#allocation2 + $0x8] sm:$0xff]
    %v322 = vld [vmem:[#allocation2 + $0x10] sm:$0xff]
    %v323 = vld [vmem:[#allocation2 + $0x18] sm:$0xff]
    %v324 = vadd.f32 %v316, %v320
    %v325 = vadd.f32 %v317, %v321
    %v326 = vadd.f32 %v318, %v322
    %v327 = vadd.f32 %v319, %v323
    %v328 = vmul.f32 %v324, 0.2
    %v329 = vmul.f32 %v325, 0.2
    %v330 = vmul.f32 %v326, 0.2
    %v331 = vmul.f32 %v327, 0.2
    %v332 = vmax.f32 %v324, %v328
    %v333 = vmax.f32 %v325, %v329
    %v334 = vmax.f32 %v326, %v330
    %v335 = vmax.f32 %v327, %v331
    %v336 = vsel %vm119, %v332, -inf
    %337 = vmax.xlane.f32.xlu0 %v336
    %v338 = vpop.xlane.xlu0 %337
    %v339 = vsel %vm119, %v333, -inf
    %340 = vmax.xlane.f32.xlu0 %v339
    %v341 = vpop.xlane.xlu0 %340
    %v342 = vsel %vm119, %v334, -inf
    %343 = vmax.xlane.f32.xlu0 %v342
    %v344 = vpop.xlane.xlu0 %343
    %v345 = vsel %vm119, %v335, -inf
    %346 = vmax.xlane.f32.xlu0 %v345
    %v347 = vpop.xlane.xlu0 %346
    %v348 = vsub.f32 %v332, %v338
    %v349 = vsub.f32 %v333, %v341
    %v350 = vsub.f32 %v334, %v344
    %v351 = vsub.f32 %v335, %v347
    %v352 = vmul.f32 %v348, 1.442695
    %v353 = vpow.pop %v352
    %v354 = vmul.f32 %v349, 1.442695
    %v355 = vpow.pop %v354
    %v356 = vmul.f32 %v350, 1.442695
    %v357 = vpow.pop %v356
    %v358 = vmul.f32 %v351, 1.442695
    %v359 = vpow.pop %v358
    %v360 = vsel %vm119, %v353, 0.0
    %361 = vadd.xlane.f32.xlu0 %v360
    %v362 = vpop.xlane.xlu0 %361
    %v363 = vsel %vm119, %v355, 0.0
    %364 = vadd.xlane.f32.xlu0 %v363
    %v365 = vpop.xlane.xlu0 %364
    %v366 = vsel %vm119, %v357, 0.0
    %367 = vadd.xlane.f32.xlu0 %v366
    %v368 = vpop.xlane.xlu0 %367
    %v369 = vsel %vm119, %v359, 0.0
    %370 = vadd.xlane.f32.xlu0 %v369
    %v371 = vpop.xlane.xlu0 %370
    %v372 = vrcp.pop %v362
    %v373 = vmul.f32 %v353, %v372
    %v374 = vrcp.pop %v365
    %v375 = vmul.f32 %v355, %v374
    %v376 = vrcp.pop %v368
    %v377 = vmul.f32 %v357, %v376
    %v378 = vrcp.pop %v371
    %v379 = vmul.f32 %v359, %v378
    %v380 = vpack.c.bf16 %v375, %v373
    %v381 = vpack.c.bf16 %v379, %v377
    %v382 = vpack.c.bf16 %v237, %v234
    %v383 = vpack.c.bf16 %v245, %v242
    %v385 = vsel %vm119, %v380, 0
    %v388 = vsel %vm119, %v381, 0
    %390 = vmatprep.subr.bf16.mxu0 0
    %391 = vmatpush1.bf16.msra.mxu0 %v382
    %392 = vmatprep.subr.bf16.mxu0 0
    %393 = vmatpush1.bf16.msra.mxu0 %v383
    %394 = vmatprep.subr.bf16.mxu0 0
    %395 = vmatpush1.bf16.msra.mxu0 0
    %396 = vmatprep.subr.bf16.mxu0 0
    %397 = vmatpush1.bf16.msra.mxu0 0
    %398 = vmatprep.subr.bf16.mxu0 0
    %399 = vmatpush1.bf16.msra.mxu0 0
    %400 = vmatprep.subr.bf16.mxu0 0
    %401 = vmatpush1.bf16.msra.mxu0 0
    %402 = vmatprep.subr.bf16.mxu0 0
    %403 = vmatpush1.bf16.msra.mxu0 0
    %404 = vmatprep.subr.bf16.mxu0 0
    %405 = vmatpush1.bf16.msra.mxu0 0
    %406 = vmatprep.subr.bf16.mxu0 0
    %407 = vmatpush1.bf16.msra.mxu0 0
    %408 = vmatprep.subr.bf16.mxu0 0
    %409 = vmatpush1.bf16.msra.mxu0 0
    %410 = vmatprep.subr.bf16.mxu0 0
    %411 = vmatpush1.bf16.msra.mxu0 0
    %412 = vmatprep.subr.bf16.mxu0 0
    %413 = vmatpush1.bf16.msra.mxu0 0
    %414 = vmatprep.subr.bf16.mxu0 0
    %415 = vmatpush1.bf16.msra.mxu0 0
    %416 = vmatprep.subr.bf16.mxu0 0
    %417 = vmatpush1.bf16.msra.mxu0 0
    %418 = vmatprep.subr.bf16.mxu0 0
    %419 = vmatpush1.bf16.msra.mxu0 0
    %420 = vmatprep.subr.bf16.mxu0 0
    %421 = vmatpush1.bf16.msra.mxu0 0
    %422 = vmatprep.mubr.bf16.mxu0 0
    %423 = vmatmul.mubr.bf16.gmra.mrb[0].mxu0 %v385
    %v424 = vpop.f32.mrb[0].mxu0
    %v425 = vadd.f32 0.0, %v424
    %v426 = vpop.f32.mrb[0].mxu0
    %v427 = vpop.f32.mrb[0].mxu0
    %v428 = vadd.f32 0.0, %v427
    %v429 = vpop.f32.mrb[0].mxu0
    %430 = vmatprep.mubr.bf16.mxu0 0
    %431 = vmatmul.mubr.bf16.gmra.mrb[0].mxu0 %v388
    %v432 = vpop.f32.mrb[0].mxu0
    %v433 = vadd.f32 0.0, %v432
    %v434 = vpop.f32.mrb[0].mxu0
    %v435 = vpop.f32.mrb[0].mxu0
    %v436 = vadd.f32 0.0, %v435
    %v437 = vpop.f32.mrb[0].mxu0
    %438 = vdwg.mxu0
    %v439 = vld [vmem:[#allocation7] sm:$0x1]
    %v441 = vlaneseq
    %v442 = vshrl.u32 %v441, 7
    %v443 = vsub.s32 0, %v442
    %v444 = vrot.slane %v439, %v443
    %v446 = vadd.f32 %v425, %v444
    %v447 = vadd.f32 %v428, %v444
    %v448 = vadd.f32 %v433, %v444
    %v449 = vadd.f32 %v436, %v444
    %v450 = vsel %vm119, %v446, 0.0
    %451 = vadd.xlane.f32.xlu0 %v450
    %v452 = vpop.xlane.xlu0 %451
    %v453 = vsel %vm119, %v447, 0.0
    %454 = vadd.xlane.f32.xlu0 %v453
    %v455 = vpop.xlane.xlu0 %454
    %v456 = vsel %vm119, %v448, 0.0
    %457 = vadd.xlane.f32.xlu0 %v456
    %v458 = vpop.xlane.xlu0 %457
    %v459 = vsel %vm119, %v449, 0.0
    %460 = vadd.xlane.f32.xlu0 %v459
    %v461 = vpop.xlane.xlu0 %460
    %v462 = vrcp.pop 32.0
    %v463 = vmul.f32 %v452, %v462
    %v464 = vmul.f32 %v455, %v462
    %v465 = vmul.f32 %v458, %v462
    %v466 = vmul.f32 %v461, %v462
    %v467 = vsub.f32 %v446, %v463
    %v468 = vsub.f32 %v447, %v464
    %v469 = vsub.f32 %v448, %v465
    %v470 = vsub.f32 %v449, %v466
    %v471 = vmul.f32 %v467, %v467
    %v472 = vmul.f32 %v468, %v468
    %v473 = vmul.f32 %v469, %v469
    %v474 = vmul.f32 %v470, %v470
    %v475 = vsel %vm119, %v471, 0.0
    %476 = vadd.xlane.f32.xlu0 %v475
    %v477 = vpop.xlane.xlu0 %476
    %v478 = vsel %vm119, %v472, 0.0
    %479 = vadd.xlane.f32.xlu0 %v478
    %v480 = vpop.xlane.xlu0 %479
    %v481 = vsel %vm119, %v473, 0.0
    %482 = vadd.xlane.f32.xlu0 %v481
    %v483 = vpop.xlane.xlu0 %482
    %v484 = vsel %vm119, %v474, 0.0
    %485 = vadd.xlane.f32.xlu0 %v484
    %v486 = vpop.xlane.xlu0 %485
    %v487 = vmul.f32 %v477, %v462
    %v488 = vmul.f32 %v480, %v462
    %v489 = vmul.f32 %v483, %v462
    %v490 = vmul.f32 %v486, %v462
    %v491 = vadd.f32 %v487, 1e-05
    %v492 = vadd.f32 %v488, 1e-05
    %v493 = vadd.f32 %v489, 1e-05
    %v494 = vadd.f32 %v490, 1e-05
    %v495 = vrsqrt.pop %v491
    %v496 = vrsqrt.pop %v492
    %v497 = vrsqrt.pop %v493
    %v498 = vrsqrt.pop %v494
    %v499 = vmul.f32 %v467, %v495
    %v500 = vmul.f32 %v468, %v496
    %v501 = vmul.f32 %v469, %v497
    %v502 = vmul.f32 %v470, %v498
    %v503 = vld [vmem:[#allocation8] sm:$0x1]
    %v505 = vlaneseq
    %v506 = vshrl.u32 %v505, 7
    %v507 = vsub.s32 0, %v506
    %v508 = vrot.slane %v503, %v507
    %v510 = vmul.f32 %v499, %v508
    %v511 = vmul.f32 %v500, %v508
    %v512 = vmul.f32 %v501, %v508
    %v513 = vmul.f32 %v502, %v508
    %v514 = vld [vmem:[#allocation10] sm:$0x1]
    %v516 = vlaneseq
    %v517 = vshrl.u32 %v516, 7
    %v518 = vsub.s32 0, %v517
    %v519 = vrot.slane %v514, %v518
    %v521 = vadd.f32 %v510, %v519
    %v522 = vadd.f32 %v511, %v519
    %v523 = vadd.f32 %v512, %v519
    %v524 = vadd.f32 %v513, %v519
    %v525 = vmul.f32 %v521, 0.5
    %v526 = vmul.f32 %v522, 0.5
    %v527 = vmul.f32 %v523, 0.5
    %v528 = vmul.f32 %v524, 0.5
    %v529 = vmul.f32 %v521, 0.70710677
    %v530 = vmul.f32 %v522, 0.70710677
    %v531 = vmul.f32 %v523, 0.70710677
    %v532 = vmul.f32 %v524, 0.70710677
    %v533 = verf.f32.pop %v529
    %v534 = verf.f32.pop %v530
    %v535 = verf.f32.pop %v531
    %v536 = verf.f32.pop %v532
    %v537 = vadd.f32 %v533, 1.0
    %v538 = vadd.f32 %v534, 1.0
    %v539 = vadd.f32 %v535, 1.0
    %v540 = vadd.f32 %v536, 1.0
    %v541 = vmul.f32 %v525, %v537
    %v542 = vmul.f32 %v526, %v538
    %v543 = vmul.f32 %v527, %v539
    %v544 = vmul.f32 %v528, %v540
    %s545 = scalar_lea.vmem %s1, 16
    %v546 = vld [vmem:[%s545] sm:$0xf]
    %v547 = vld [vmem:[%s545 + $0x4] sm:$0xf]
    %v548 = vld [vmem:[%s545 + $0x8] sm:$0xf]
    %v549 = vld [vmem:[%s545 + $0xc] sm:$0xf]
    %v550 = vpack.c.bf16 %v542, %v541
    %v551 = vpack.c.bf16 %v544, %v543
    %v556 = vunpack.c.l.b16 %v546
    %v557 = vunpack.c.l.b16 %v547
    %v558 = vunpack.c.l.b16 %v548
    %v559 = vunpack.c.l.b16 %v549
    %v560 = vpack.c.b16 %v557, %v556
    %v561 = vpack.c.b16 %v559, %v558
    %v563 = vsel %vm119, %v560, 0
    %v566 = vsel %vm119, %v561, 0
    %568 = vmatprep.subr.bf16.mxu0 0
    %569 = vmatpush1.bf16.msra.mxu0 %v550
    %570 = vmatprep.subr.bf16.mxu0 0
    %571 = vmatpush1.bf16.msra.mxu0 %v551
    %572 = vmatprep.subr.bf16.mxu0 0
    %573 = vmatpush1.bf16.msra.mxu0 0
    %574 = vmatprep.subr.bf16.mxu0 0
    %575 = vmatpush1.bf16.msra.mxu0 0
    %576 = vmatprep.subr.bf16.mxu0 0
    %577 = vmatpush1.bf16.msra.mxu0 0
    %578 = vmatprep.subr.bf16.mxu0 0
    %579 = vmatpush1.bf16.msra.mxu0 0
    %580 = vmatprep.subr.bf16.mxu0 0
    %581 = vmatpush1.bf16.msra.mxu0 0
    %582 = vmatprep.subr.bf16.mxu0 0
    %583 = vmatpush1.bf16.msra.mxu0 0
    %584 = vmatprep.subr.bf16.mxu0 0
    %585 = vmatpush1.bf16.msra.mxu0 0
    %586 = vmatprep.subr.bf16.mxu0 0
    %587 = vmatpush1.bf16.msra.mxu0 0
    %588 = vmatprep.subr.bf16.mxu0 0
    %589 = vmatpush1.bf16.msra.mxu0 0
    %590 = vmatprep.subr.bf16.mxu0 0
    %591 = vmatpush1.bf16.msra.mxu0 0
    %592 = vmatprep.subr.bf16.mxu0 0
    %593 = vmatpush1.bf16.msra.mxu0 0
    %594 = vmatprep.subr.bf16.mxu0 0
    %595 = vmatpush1.bf16.msra.mxu0 0
    %596 = vmatprep.subr.bf16.mxu0 0
    %597 = vmatpush1.bf16.msra.mxu0 0
    %598 = vmatprep.subr.bf16.mxu0 0
    %599 = vmatpush1.bf16.msra.mxu0 0
    %600 = vmatprep.mubr.bf16.mxu0 0
    %601 = vmatmul.mubr.bf16.gmra.mrb[0].mxu0 %v563
    %v602 = vpop.f32.mrb[0].mxu0
    %v603 = vadd.f32 0.0, %v602
    %v604 = vpop.f32.mrb[0].mxu0
    %v605 = vpop.f32.mrb[0].mxu0
    %v606 = vadd.f32 0.0, %v605
    %v607 = vpop.f32.mrb[0].mxu0
    %608 = vmatprep.mubr.bf16.mxu0 0
    %609 = vmatmul.mubr.bf16.gmra.mrb[0].mxu0 %v566
    %v610 = vpop.f32.mrb[0].mxu0
    %v611 = vadd.f32 0.0, %v610
    %v612 = vpop.f32.mrb[0].mxu0
    %v613 = vpop.f32.mrb[0].mxu0
    %v614 = vadd.f32 0.0, %v613
    %v615 = vpop.f32.mrb[0].mxu0
    %616 = vdwg.mxu0
    %v617 = vpack.c.bf16 %v606, %v603
    %v618 = vpack.c.bf16 %v614, %v611
    %s619 = scalar_lea.vmem [#allocation5], 16
    %v620 = vld [vmem:[%s619] sm:$0xf]
    %v621 = vld [vmem:[%s619 + $0x4] sm:$0xf]
    %v622 = vld [vmem:[%s619 + $0x8] sm:$0xf]
    %v623 = vld [vmem:[%s619 + $0xc] sm:$0xf]
    %v628 = vunpack.c.l.b16 %v620
    %v629 = vunpack.c.l.b16 %v621
    %v630 = vunpack.c.l.b16 %v622
    %v631 = vunpack.c.l.b16 %v623
    %v632 = vpack.c.b16 %v629, %v628
    %v633 = vpack.c.b16 %v631, %v630
    %v637 = vsel %vm119, %v617, 0
    %v640 = vsel %vm119, %v618, 0
    %642 = vmatprep.subr.bf16.mxu0 0
    %643 = vmatpush1.bf16.msra.mxu0 %v632
    %644 = vmatprep.subr.bf16.mxu0 0
    %645 = vmatpush1.bf16.msra.mxu0 %v633
    %646 = vmatprep.subr.bf16.mxu0 0
    %647 = vmatpush1.bf16.msra.mxu0 0
    %648 = vmatprep.subr.bf16.mxu0 0
    %649 = vmatpush1.bf16.msra.mxu0 0
    %650 = vmatprep.subr.bf16.mxu0 0
    %651 = vmatpush1.bf16.msra.mxu0 0
    %652 = vmatprep.subr.bf16.mxu0 0
    %653 = vmatpush1.bf16.msra.mxu0 0
    %654 = vmatprep.subr.bf16.mxu0 0
    %655 = vmatpush1.bf16.msra.mxu0 0
    %656 = vmatprep.subr.bf16.mxu0 0
    %657 = vmatpush1.bf16.msra.mxu0 0
    %658 = vmatprep.subr.bf16.mxu0 0
    %659 = vmatpush1.bf16.msra.mxu0 0
    %660 = vmatprep.subr.bf16.mxu0 0
    %661 = vmatpush1.bf16.msra.mxu0 0
    %662 = vmatprep.subr.bf16.mxu0 0
    %663 = vmatpush1.bf16.msra.mxu0 0
    %664 = vmatprep.subr.bf16.mxu0 0
    %665 = vmatpush1.bf16.msra.mxu0 0
    %666 = vmatprep.subr.bf16.mxu0 0
    %667 = vmatpush1.bf16.msra.mxu0 0
    %668 = vmatprep.subr.bf16.mxu0 0
    %669 = vmatpush1.bf16.msra.mxu0 0
    %670 = vmatprep.subr.bf16.mxu0 0
    %671 = vmatpush1.bf16.msra.mxu0 0
    %672 = vmatprep.subr.bf16.mxu0 0
    %673 = vmatpush1.bf16.msra.mxu0 0
    %674 = vmatprep.mubr.bf16.mxu0 0
    %675 = vmatmul.mubr.bf16.gmra.mrb[0].mxu0 %v637
    %v676 = vpop.f32.mrb[0].mxu0
    %v677 = vadd.f32 0.0, %v676
    %v678 = vpop.f32.mrb[0].mxu0
    %v679 = vpop.f32.mrb[0].mxu0
    %v680 = vadd.f32 0.0, %v679
    %v681 = vpop.f32.mrb[0].mxu0
    %682 = vmatprep.mubr.bf16.mxu0 0
    %683 = vmatmul.mubr.bf16.gmra.mrb[0].mxu0 %v640
    %v684 = vpop.f32.mrb[0].mxu0
    %v685 = vadd.f32 0.0, %v684
    %v686 = vpop.f32.mrb[0].mxu0
    %v687 = vpop.f32.mrb[0].mxu0
    %v688 = vadd.f32 0.0, %v687
    %v689 = vpop.f32.mrb[0].mxu0
    %690 = vdwg.mxu0
    %s691 = scalar_lea.vmem %s4, 1
    %v692 = vld [vmem:[%s691] sm:$0x1]
    %v694 = vsel %vm119, %v692, 0
    %696 = vmatprep.subr.bf16.mxu0 0
    %697 = vmatpush1.bf16.xpose.msra.mxu0 %v637
    %698 = vmatprep.subr.bf16.mxu0 0
    %699 = vmatpush1.bf16.xpose.msra.mxu0 %v640
    %700 = vmatprep.subr.bf16.mxu0 0
    %701 = vmatpush1.bf16.xpose.msra.mxu0 0
    %702 = vmatprep.subr.bf16.mxu0 0
    %703 = vmatpush1.bf16.xpose.msra.mxu0 0
    %704 = vmatprep.subr.bf16.mxu0 0
    %705 = vmatpush1.bf16.xpose.msra.mxu0 0
    %706 = vmatprep.subr.bf16.mxu0 0
    %707 = vmatpush1.bf16.xpose.msra.mxu0 0
    %708 = vmatprep.subr.bf16.mxu0 0
    %709 = vmatpush1.bf16.xpose.msra.mxu0 0
    %710 = vmatprep.subr.bf16.mxu0 0
    %711 = vmatpush1.bf16.xpose.msra.mxu0 0
    %712 = vmatprep.subr.bf16.mxu0 0
    %713 = vmatpush1.bf16.xpose.msra.mxu0 0
    %714 = vmatprep.subr.bf16.mxu0 0
    %715 = vmatpush1.bf16.xpose.msra.mxu0 0
    %716 = vmatprep.subr.bf16.mxu0 0
    %717 = vmatpush1.bf16.xpose.msra.mxu0 0
    %718 = vmatprep.subr.bf16.mxu0 0
    %719 = vmatpush1.bf16.xpose.msra.mxu0 0
    %720 = vmatprep.subr.bf16.mxu0 0
    %721 = vmatpush1.bf16.xpose.msra.mxu0 0
    %722 = vmatprep.subr.bf16.mxu0 0
    %723 = vmatpush1.bf16.xpose.msra.mxu0 0
    %724 = vmatprep.subr.bf16.mxu0 0
    %725 = vmatpush1.bf16.xpose.msra.mxu0 0
    %726 = vmatprep.subr.bf16.mxu0 0
    %727 = vmatpush1.bf16.xpose.msra.mxu0 0
    %728 = vmatprep.mubr.bf16.mxu0 0
    %729 = vmatmul.mubr.bf16.gmra.mrb[0].mxu0 %v694
    %v730 = vpop.f32.mrb[0].mxu0
    %v731 = vadd.f32 0.0, %v730
    %v732 = vpop.f32.mrb[0].mxu0
    %v733 = vpop.f32.mrb[0].mxu0
    %v734 = vpop.f32.mrb[0].mxu0
    %735 = vdwg.mxu0
    %737 = vset.pattern.permute.xlu0 32
    %738 = vperm.xlu0 %737, %v677
    %v739 = vpop.permute.xlu0 %738
    %742 = vset.pattern.permute.xlu0 32
    %743 = vperm.xlu0 %742, %v680
    %v744 = vpop.permute.xlu0 %743
    %747 = vset.pattern.permute.xlu0 32
    %748 = vperm.xlu0 %747, %v685
    %v749 = vpop.permute.xlu0 %748
    %752 = vset.pattern.permute.xlu0 32
    %753 = vperm.xlu0 %752, %v688
    %v754 = vpop.permute.xlu0 %753
    %v756 = vlaneseq
    %v757 = vshrl.u32 %v756, 7
    %v758 = vsub.s32 0, %v757
    %v759 = vrot.slane %v731, %v758
    %v760 = vadd.f32 %v739, %v759
    %v761 = vadd.f32 %v744, %v759
    %v762 = vadd.f32 %v749, %v759
    %v763 = vadd.f32 %v754, %v759
    %s764 = scalar_lea.vmem [#allocation2], 32
    %v765 = vld [vmem:[%s764] sm:$0xff]
    %v766 = vld [vmem:[%s764 + $0x8] sm:$0xff]
    %v767 = vld [vmem:[%s764 + $0x10] sm:$0xff]
    %v768 = vld [vmem:[%s764 + $0x18] sm:$0xff]
    %v769 = vadd.f32 %v760, %v765
    %v770 = vadd.f32 %v761, %v766
    %v771 = vadd.f32 %v762, %v767
    %v772 = vadd.f32 %v763, %v768
    %v773 = vmul.f32 %v769, 0.2
    %v774 = vmul.f32 %v770, 0.2
    %v775 = vmul.f32 %v771, 0.2
    %v776 = vmul.f32 %v772, 0.2
    %v777 = vmax.f32 %v769, %v773
    %v778 = vmax.f32 %v770, %v774
    %v779 = vmax.f32 %v771, %v775
    %v780 = vmax.f32 %v772, %v776
    %v781 = vsel %vm119, %v777, -inf
    %782 = vmax.xlane.f32.xlu0 %v781
    %v783 = vpop.xlane.xlu0 %782
    %v784 = vsel %vm119, %v778, -inf
    %785 = vmax.xlane.f32.xlu0 %v784
    %v786 = vpop.xlane.xlu0 %785
    %v787 = vsel %vm119, %v779, -inf
    %788 = vmax.xlane.f32.xlu0 %v787
    %v789 = vpop.xlane.xlu0 %788
    %v790 = vsel %vm119, %v780, -inf
    %791 = vmax.xlane.f32.xlu0 %v790
    %v792 = vpop.xlane.xlu0 %791
    %v793 = vsub.f32 %v777, %v783
    %v794 = vsub.f32 %v778, %v786
    %v795 = vsub.f32 %v779, %v789
    %v796 = vsub.f32 %v780, %v792
    %v797 = vmul.f32 %v793, 1.442695
    %v798 = vpow.pop %v797
    %v799 = vmul.f32 %v794, 1.442695
    %v800 = vpow.pop %v799
    %v801 = vmul.f32 %v795, 1.442695
    %v802 = vpow.pop %v801
    %v803 = vmul.f32 %v796, 1.442695
    %v804 = vpow.pop %v803
    %v805 = vsel %vm119, %v798, 0.0
    %806 = vadd.xlane.f32.xlu0 %v805
    %v807 = vpop.xlane.xlu0 %806
    %v808 = vsel %vm119, %v800, 0.0
    %809 = vadd.xlane.f32.xlu0 %v808
    %v810 = vpop.xlane.xlu0 %809
    %v811 = vsel %vm119, %v802, 0.0
    %812 = vadd.xlane.f32.xlu0 %v811
    %v813 = vpop.xlane.xlu0 %812
    %v814 = vsel %vm119, %v804, 0.0
    %815 = vadd.xlane.f32.xlu0 %v814
    %v816 = vpop.xlane.xlu0 %815
    %v817 = vrcp.pop %v807
    %v818 = vmul.f32 %v798, %v817
    %v819 = vrcp.pop %v810
    %v820 = vmul.f32 %v800, %v819
    %v821 = vrcp.pop %v813
    %v822 = vmul.f32 %v802, %v821
    %v823 = vrcp.pop %v816
    %v824 = vmul.f32 %v804, %v823
    %v825 = vpack.c.bf16 %v820, %v818
    %v826 = vpack.c.bf16 %v824, %v822
    %v827 = vpack.c.bf16 %v680, %v677
    %v828 = vpack.c.bf16 %v688, %v685
    %v830 = vsel %vm119, %v825, 0
    %v833 = vsel %vm119, %v826, 0
    %835 = vmatprep.subr.bf16.mxu0 0
    %836 = vmatpush1.bf16.msra.mxu0 %v827
    %837 = vmatprep.subr.bf16.mxu0 0
    %838 = vmatpush1.bf16.msra.mxu0 %v828
    %839 = vmatprep.subr.bf16.mxu0 0
    %840 = vmatpush1.bf16.msra.mxu0 0
    %841 = vmatprep.subr.bf16.mxu0 0
    %842 = vmatpush1.bf16.msra.mxu0 0
    %843 = vmatprep.subr.bf16.mxu0 0
    %844 = vmatpush1.bf16.msra.mxu0 0
    %845 = vmatprep.subr.bf16.mxu0 0
    %846 = vmatpush1.bf16.msra.mxu0 0
    %847 = vmatprep.subr.bf16.mxu0 0
    %848 = vmatpush1.bf16.msra.mxu0 0
    %849 = vmatprep.subr.bf16.mxu0 0
    %850 = vmatpush1.bf16.msra.mxu0 0
    %851 = vmatprep.subr.bf16.mxu0 0
    %852 = vmatpush1.bf16.msra.mxu0 0
    %853 = vmatprep.subr.bf16.mxu0 0
    %854 = vmatpush1.bf16.msra.mxu0 0
    %855 = vmatprep.subr.bf16.mxu0 0
    %856 = vmatpush1.bf16.msra.mxu0 0
    %857 = vmatprep.subr.bf16.mxu0 0
    %858 = vmatpush1.bf16.msra.mxu0 0
    %859 = vmatprep.subr.bf16.mxu0 0
    %860 = vmatpush1.bf16.msra.mxu0 0
    %861 = vmatprep.subr.bf16.mxu0 0
    %862 = vmatpush1.bf16.msra.mxu0 0
    %863 = vmatprep.subr.bf16.mxu0 0
    %864 = vmatpush1.bf16.msra.mxu0 0
    %865 = vmatprep.subr.bf16.mxu0 0
    %866 = vmatpush1.bf16.msra.mxu0 0
    %867 = vmatprep.mubr.bf16.mxu0 0
    %868 = vmatmul.mubr.bf16.gmra.mrb[0].mxu0 %v830
    %v869 = vpop.f32.mrb[0].mxu0
    %v870 = vadd.f32 0.0, %v869
    %v871 = vpop.f32.mrb[0].mxu0
    %v872 = vpop.f32.mrb[0].mxu0
    %v873 = vadd.f32 0.0, %v872
    %v874 = vpop.f32.mrb[0].mxu0
    %875 = vmatprep.mubr.bf16.mxu0 0
    %876 = vmatmul.mubr.bf16.gmra.mrb[0].mxu0 %v833
    %v877 = vpop.f32.mrb[0].mxu0
    %v878 = vadd.f32 0.0, %v877
    %v879 = vpop.f32.mrb[0].mxu0
    %v880 = vpop.f32.mrb[0].mxu0
    %v881 = vadd.f32 0.0, %v880
    %v882 = vpop.f32.mrb[0].mxu0
    %883 = vdwg.mxu0
    %s884 = scalar_lea.vmem [#allocation7], 1
    %v885 = vld [vmem:[%s884] sm:$0x1]
    %v887 = vlaneseq
    %v888 = vshrl.u32 %v887, 7
    %v889 = vsub.s32 0, %v888
    %v890 = vrot.slane %v885, %v889
    %v892 = vadd.f32 %v870, %v890
    %v893 = vadd.f32 %v873, %v890
    %v894 = vadd.f32 %v878, %v890
    %v895 = vadd.f32 %v881, %v890
    %v896 = vsel %vm119, %v892, 0.0
    %897 = vadd.xlane.f32.xlu0 %v896
    %v898 = vpop.xlane.xlu0 %897
    %v899 = vsel %vm119, %v893, 0.0
    %900 = vadd.xlane.f32.xlu0 %v899
    %v901 = vpop.xlane.xlu0 %900
    %v902 = vsel %vm119, %v894, 0.0
    %903 = vadd.xlane.f32.xlu0 %v902
    %v904 = vpop.xlane.xlu0 %903
    %v905 = vsel %vm119, %v895, 0.0
    %906 = vadd.xlane.f32.xlu0 %v905
    %v907 = vpop.xlane.xlu0 %906
    %v908 = vmul.f32 %v898, %v462
    %v909 = vmul.f32 %v901, %v462
    %v910 = vmul.f32 %v904, %v462
    %v911 = vmul.f32 %v907, %v462
    %v912 = vsub.f32 %v892, %v908
    %v913 = vsub.f32 %v893, %v909
    %v914 = vsub.f32 %v894, %v910
    %v915 = vsub.f32 %v895, %v911
    %v916 = vmul.f32 %v912, %v912
    %v917 = vmul.f32 %v913, %v913
    %v918 = vmul.f32 %v914, %v914
    %v919 = vmul.f32 %v915, %v915
    %v920 = vsel %vm119, %v916, 0.0
    %921 = vadd.xlane.f32.xlu0 %v920
    %v922 = vpop.xlane.xlu0 %921
    %v923 = vsel %vm119, %v917, 0.0
    %924 = vadd.xlane.f32.xlu0 %v923
    %v925 = vpop.xlane.xlu0 %924
    %v926 = vsel %vm119, %v918, 0.0
    %927 = vadd.xlane.f32.xlu0 %v926
    %v928 = vpop.xlane.xlu0 %927
    %v929 = vsel %vm119, %v919, 0.0
    %930 = vadd.xlane.f32.xlu0 %v929
    %v931 = vpop.xlane.xlu0 %930
    %v932 = vmul.f32 %v922, %v462
    %v933 = vmul.f32 %v925, %v462
    %v934 = vmul.f32 %v928, %v462
    %v935 = vmul.f32 %v931, %v462
    %v936 = vadd.f32 %v932, 1e-05
    %v937 = vadd.f32 %v933, 1e-05
    %v938 = vadd.f32 %v934, 1e-05
    %v939 = vadd.f32 %v935, 1e-05
    %v940 = vrsqrt.pop %v936
    %v941 = vrsqrt.pop %v937
    %v942 = vrsqrt.pop %v938
    %v943 = vrsqrt.pop %v939
    %v944 = vmul.f32 %v912, %v940
    %v945 = vmul.f32 %v913, %v941
    %v946 = vmul.f32 %v914, %v942
    %v947 = vmul.f32 %v915, %v943
    %s948 = scalar_lea.vmem [#allocation8], 1
    %v949 = vld [vmem:[%s948] sm:$0x1]
    %v951 = vlaneseq
    %v952 = vshrl.u32 %v951, 7
    %v953 = vsub.s32 0, %v952
    %v954 = vrot.slane %v949, %v953
    %v956 = vmul.f32 %v944, %v954
    %v957 = vmul.f32 %v945, %v954
    %v958 = vmul.f32 %v946, %v954
    %v959 = vmul.f32 %v947, %v954
    %s960 = scalar_lea.vmem [#allocation10], 1
    %v961 = vld [vmem:[%s960] sm:$0x1]
    %v963 = vlaneseq
    %v964 = vshrl.u32 %v963, 7
    %v965 = vsub.s32 0, %v964
    %v966 = vrot.slane %v961, %v965
    %v968 = vadd.f32 %v956, %v966
    %v969 = vadd.f32 %v957, %v966
    %v970 = vadd.f32 %v958, %v966
    %v971 = vadd.f32 %v959, %v966
    %v972 = vmul.f32 %v968, 0.5
    %v973 = vmul.f32 %v969, 0.5
    %v974 = vmul.f32 %v970, 0.5
    %v975 = vmul.f32 %v971, 0.5
    %v976 = vmul.f32 %v968, 0.70710677
    %v977 = vmul.f32 %v969, 0.70710677
    %v978 = vmul.f32 %v970, 0.70710677
    %v979 = vmul.f32 %v971, 0.70710677
    %v980 = verf.f32.pop %v976
    %v981 = verf.f32.pop %v977
    %v982 = verf.f32.pop %v978
    %v983 = verf.f32.pop %v979
    %v984 = vadd.f32 %v980, 1.0
    %v985 = vadd.f32 %v981, 1.0
    %v986 = vadd.f32 %v982, 1.0
    %v987 = vadd.f32 %v983, 1.0
    %v988 = vmul.f32 %v972, %v984
    %v989 = vmul.f32 %v973, %v985
    %v990 = vmul.f32 %v974, %v986
    %v991 = vmul.f32 %v975, %v987
    %s992 = scalar_lea.vmem %s1, 32
    %v993 = vld [vmem:[%s992] sm:$0xf]
    %v994 = vld [vmem:[%s992 + $0x4] sm:$0xf]
    %v995 = vld [vmem:[%s992 + $0x8] sm:$0xf]
    %v996 = vld [vmem:[%s992 + $0xc] sm:$0xf]
    %v997 = vpack.c.bf16 %v989, %v988
    %v998 = vpack.c.bf16 %v991, %v990
    %v1003 = vunpack.c.l.b16 %v993
    %v1004 = vunpack.c.l.b16 %v994
    %v1005 = vunpack.c.l.b16 %v995
    %v1006 = vunpack.c.l.b16 %v996
    %v1007 = vpack.c.b16 %v1004, %v1003
    %v1008 = vpack.c.b16 %v1006, %v1005
    %v1010 = vsel %vm119, %v1007, 0
    %v1013 = vsel %vm119, %v1008, 0
    %1015 = vmatprep.subr.bf16.mxu0 0
    %1016 = vmatpush1.bf16.msra.mxu0 %v997
    %1017 = vmatprep.subr.bf16.mxu0 0
    %1018 = vmatpush1.bf16.msra.mxu0 %v998
    %1019 = vmatprep.subr.bf16.mxu0 0
    %1020 = vmatpush1.bf16.msra.mxu0 0
    %1021 = vmatprep.subr.bf16.mxu0 0
    %1022 = vmatpush1.bf16.msra.mxu0 0
    %1023 = vmatprep.subr.bf16.mxu0 0
    %1024 = vmatpush1.bf16.msra.mxu0 0
    %1025 = vmatprep.subr.bf16.mxu0 0
    %1026 = vmatpush1.bf16.msra.mxu0 0
    %1027 = vmatprep.subr.bf16.mxu0 0
    %1028 = vmatpush1.bf16.msra.mxu0 0
    %1029 = vmatprep.subr.bf16.mxu0 0
    %1030 = vmatpush1.bf16.msra.mxu0 0
    %1031 = vmatprep.subr.bf16.mxu0 0
    %1032 = vmatpush1.bf16.msra.mxu0 0
    %1033 = vmatprep.subr.bf16.mxu0 0
    %1034 = vmatpush1.bf16.msra.mxu0 0
    %1035 = vmatprep.subr.bf16.mxu0 0
    %1036 = vmatpush1.bf16.msra.mxu0 0
    %1037 = vmatprep.subr.bf16.mxu0 0
    %1038 = vmatpush1.bf16.msra.mxu0 0
    %1039 = vmatprep.subr.bf16.mxu0 0
    %1040 = vmatpush1.bf16.msra.mxu0 0
    %1041 = vmatprep.subr.bf16.mxu0 0
    %1042 = vmatpush1.bf16.msra.mxu0 0
    %1043 = vmatprep.subr.bf16.mxu0 0
    %1044 = vmatpush1.bf16.msra.mxu0 0
    %1045 = vmatprep.subr.bf16.mxu0 0
    %1046 = vmatpush1.bf16.msra.mxu0 0
    %1047 = vmatprep.mubr.bf16.mxu0 0
    %1048 = vmatmul.mubr.bf16.gmra.mrb[0].mxu0 %v1010
    %v1049 = vpop.f32.mrb[0].mxu0
    %v1050 = vadd.f32 0.0, %v1049
    %v1051 = vpop.f32.mrb[0].mxu0
    %v1052 = vpop.f32.mrb[0].mxu0
    %v1053 = vadd.f32 0.0, %v1052
    %v1054 = vpop.f32.mrb[0].mxu0
    %1055 = vmatprep.mubr.bf16.mxu0 0
    %1056 = vmatmul.mubr.bf16.gmra.mrb[0].mxu0 %v1013
    %v1057 = vpop.f32.mrb[0].mxu0
    %v1058 = vadd.f32 0.0, %v1057
    %v1059 = vpop.f32.mrb[0].mxu0
    %v1060 = vpop.f32.mrb[0].mxu0
    %v1061 = vadd.f32 0.0, %v1060
    %v1062 = vpop.f32.mrb[0].mxu0
    %1063 = vdwg.mxu0
    %v1064 = vpack.c.bf16 %v1053, %v1050
    %v1065 = vpack.c.bf16 %v1061, %v1058
    %s1066 = scalar_lea.vmem [#allocation5], 32
    %v1067 = vld [vmem:[%s1066] sm:$0xf]
    %v1068 = vld [vmem:[%s1066 + $0x4] sm:$0xf]
    %v1069 = vld [vmem:[%s1066 + $0x8] sm:$0xf]
    %v1070 = vld [vmem:[%s1066 + $0xc] sm:$0xf]
    %v1075 = vunpack.c.l.b16 %v1067
    %v1076 = vunpack.c.l.b16 %v1068
    %v1077 = vunpack.c.l.b16 %v1069
    %v1078 = vunpack.c.l.b16 %v1070
    %v1079 = vpack.c.b16 %v1076, %v1075
    %v1080 = vpack.c.b16 %v1078, %v1077
    %v1084 = vsel %vm119, %v1064, 0
    %v1087 = vsel %vm119, %v1065, 0
    %1089 = vmatprep.subr.bf16.mxu0 0
    %1090 = vmatpush1.bf16.msra.mxu0 %v1079
    %1091 = vmatprep.subr.bf16.mxu0 0
    %1092 = vmatpush1.bf16.msra.mxu0 %v1080
    %1093 = vmatprep.subr.bf16.mxu0 0
    %1094 = vmatpush1.bf16.msra.mxu0 0
    %1095 = vmatprep.subr.bf16.mxu0 0
    %1096 = vmatpush1.bf16.msra.mxu0 0
    %1097 = vmatprep.subr.bf16.mxu0 0
    %1098 = vmatpush1.bf16.msra.mxu0 0
    %1099 = vmatprep.subr.bf16.mxu0 0
    %1100 = vmatpush1.bf16.msra.mxu0 0
    %1101 = vmatprep.subr.bf16.mxu0 0
    %1102 = vmatpush1.bf16.msra.mxu0 0
    %1103 = vmatprep.subr.bf16.mxu0 0
    %1104 = vmatpush1.bf16.msra.mxu0 0
    %1105 = vmatprep.subr.bf16.mxu0 0
    %1106 = vmatpush1.bf16.msra.mxu0 0
    %1107 = vmatprep.subr.bf16.mxu0 0
    %1108 = vmatpush1.bf16.msra.mxu0 0
    %1109 = vmatprep.subr.bf16.mxu0 0
    %1110 = vmatpush1.bf16.msra.mxu0 0
    %1111 = vmatprep.subr.bf16.mxu0 0
    %1112 = vmatpush1.bf16.msra.mxu0 0
    %1113 = vmatprep.subr.bf16.mxu0 0
    %1114 = vmatpush1.bf16.msra.mxu0 0
    %1115 = vmatprep.subr.bf16.mxu0 0
    %1116 = vmatpush1.bf16.msra.mxu0 0
    %1117 = vmatprep.subr.bf16.mxu0 0
    %1118 = vmatpush1.bf16.msra.mxu0 0
    %1119 = vmatprep.subr.bf16.mxu0 0
    %1120 = vmatpush1.bf16.msra.mxu0 0
    %1121 = vmatprep.mubr.bf16.mxu0 0
    %1122 = vmatmul.mubr.bf16.gmra.mrb[0].mxu0 %v1084
    %v1123 = vpop.f32.mrb[0].mxu0
    %v1124 = vadd.f32 0.0, %v1123
    %v1125 = vpop.f32.mrb[0].mxu0
    %v1126 = vpop.f32.mrb[0].mxu0
    %v1127 = vadd.f32 0.0, %v1126
    %v1128 = vpop.f32.mrb[0].mxu0
    %1129 = vmatprep.mubr.bf16.mxu0 0
    %1130 = vmatmul.mubr.bf16.gmra.mrb[0].mxu0 %v1087
    %v1131 = vpop.f32.mrb[0].mxu0
    %v1132 = vadd.f32 0.0, %v1131
    %v1133 = vpop.f32.mrb[0].mxu0
    %v1134 = vpop.f32.mrb[0].mxu0
    %v1135 = vadd.f32 0.0, %v1134
    %v1136 = vpop.f32.mrb[0].mxu0
    %1137 = vdwg.mxu0
    %s1138 = scalar_lea.vmem %s4, 2
    %v1139 = vld [vmem:[%s1138] sm:$0x1]
    %v1141 = vsel %vm119, %v1139, 0
    %1143 = vmatprep.subr.bf16.mxu0 0
    %1144 = vmatpush1.bf16.xpose.msra.mxu0 %v1084
    %1145 = vmatprep.subr.bf16.mxu0 0
    %1146 = vmatpush1.bf16.xpose.msra.mxu0 %v1087
    %1147 = vmatprep.subr.bf16.mxu0 0
    %1148 = vmatpush1.bf16.xpose.msra.mxu0 0
    %1149 = vmatprep.subr.bf16.mxu0 0
    %1150 = vmatpush1.bf16.xpose.msra.mxu0 0
    %1151 = vmatprep.subr.bf16.mxu0 0
    %1152 = vmatpush1.bf16.xpose.msra.mxu0 0
    %1153 = vmatprep.subr.bf16.mxu0 0
    %1154 = vmatpush1.bf16.xpose.msra.mxu0 0
    %1155 = vmatprep.subr.bf16.mxu0 0
    %1156 = vmatpush1.bf16.xpose.msra.mxu0 0
    %1157 = vmatprep.subr.bf16.mxu0 0
    %1158 = vmatpush1.bf16.xpose.msra.mxu0 0
    %1159 = vmatprep.subr.bf16.mxu0 0
    %1160 = vmatpush1.bf16.xpose.msra.mxu0 0
    %1161 = vmatprep.subr.bf16.mxu0 0
    %1162 = vmatpush1.bf16.xpose.msra.mxu0 0
    %1163 = vmatprep.subr.bf16.mxu0 0
    %1164 = vmatpush1.bf16.xpose.msra.mxu0 0
    %1165 = vmatprep.subr.bf16.mxu0 0
    %1166 = vmatpush1.bf16.xpose.msra.mxu0 0
    %1167 = vmatprep.subr.bf16.mxu0 0
    %1168 = vmatpush1.bf16.xpose.msra.mxu0 0
    %1169 = vmatprep.subr.bf16.mxu0 0
    %1170 = vmatpush1.bf16.xpose.msra.mxu0 0
    %1171 = vmatprep.subr.bf16.mxu0 0
    %1172 = vmatpush1.bf16.xpose.msra.mxu0 0
    %1173 = vmatprep.subr.bf16.mxu0 0
    %1174 = vmatpush1.bf16.xpose.msra.mxu0 0
    %1175 = vmatprep.mubr.bf16.mxu0 0
    %1176 = vmatmul.mubr.bf16.gmra.mrb[0].mxu0 %v1141
    %v1177 = vpop.f32.mrb[0].mxu0
    %v1178 = vadd.f32 0.0, %v1177
    %v1179 = vpop.f32.mrb[0].mxu0
    %v1180 = vpop.f32.mrb[0].mxu0
    %v1181 = vpop.f32.mrb[0].mxu0
    %1182 = vdwg.mxu0
    %1184 = vset.pattern.permute.xlu0 32
    %1185 = vperm.xlu0 %1184, %v1124
    %v1186 = vpop.permute.xlu0 %1185
    %1189 = vset.pattern.permute.xlu0 32
    %1190 = vperm.xlu0 %1189, %v1127
    %v1191 = vpop.permute.xlu0 %1190
    %1194 = vset.pattern.permute.xlu0 32
    %1195 = vperm.xlu0 %1194, %v1132
    %v1196 = vpop.permute.xlu0 %1195
    %1199 = vset.pattern.permute.xlu0 32
    %1200 = vperm.xlu0 %1199, %v1135
    %v1201 = vpop.permute.xlu0 %1200
    %v1203 = vlaneseq
    %v1204 = vshrl.u32 %v1203, 7
    %v1205 = vsub.s32 0, %v1204
    %v1206 = vrot.slane %v1178, %v1205
    %v1207 = vadd.f32 %v1186, %v1206
    %v1208 = vadd.f32 %v1191, %v1206
    %v1209 = vadd.f32 %v1196, %v1206
    %v1210 = vadd.f32 %v1201, %v1206
    %s1211 = scalar_lea.vmem [#allocation2], 64
    %v1212 = vld [vmem:[%s1211] sm:$0xff]
    %v1213 = vld [vmem:[%s1211 + $0x8] sm:$0xff]
    %v1214 = vld [vmem:[%s1211 + $0x10] sm:$0xff]
    %v1215 = vld [vmem:[%s1211 + $0x18] sm:$0xff]
    %v1216 = vadd.f32 %v1207, %v1212
    %v1217 = vadd.f32 %v1208, %v1213
    %v1218 = vadd.f32 %v1209, %v1214
    %v1219 = vadd.f32 %v1210, %v1215
    %v1220 = vmul.f32 %v1216, 0.2
    %v1221 = vmul.f32 %v1217, 0.2
    %v1222 = vmul.f32 %v1218, 0.2
    %v1223 = vmul.f32 %v1219, 0.2
    %v1224 = vmax.f32 %v1216, %v1220
    %v1225 = vmax.f32 %v1217, %v1221
    %v1226 = vmax.f32 %v1218, %v1222
    %v1227 = vmax.f32 %v1219, %v1223
    %v1228 = vsel %vm119, %v1224, -inf
    %1229 = vmax.xlane.f32.xlu0 %v1228
    %v1230 = vpop.xlane.xlu0 %1229
    %v1231 = vsel %vm119, %v1225, -inf
    %1232 = vmax.xlane.f32.xlu0 %v1231
    %v1233 = vpop.xlane.xlu0 %1232
    %v1234 = vsel %vm119, %v1226, -inf
    %1235 = vmax.xlane.f32.xlu0 %v1234
    %v1236 = vpop.xlane.xlu0 %1235
    %v1237 = vsel %vm119, %v1227, -inf
    %1238 = vmax.xlane.f32.xlu0 %v1237
    %v1239 = vpop.xlane.xlu0 %1238
    %v1240 = vsub.f32 %v1224, %v1230
    %v1241 = vsub.f32 %v1225, %v1233
    %v1242 = vsub.f32 %v1226, %v1236
    %v1243 = vsub.f32 %v1227, %v1239
    %v1244 = vmul.f32 %v1240, 1.442695
    %v1245 = vpow.pop %v1244
    %v1246 = vmul.f32 %v1241, 1.442695
    %v1247 = vpow.pop %v1246
    %v1248 = vmul.f32 %v1242, 1.442695
    %v1249 = vpow.pop %v1248
    %v1250 = vmul.f32 %v1243, 1.442695
    %v1251 = vpow.pop %v1250
    %v1252 = vsel %vm119, %v1245, 0.0
    %1253 = vadd.xlane.f32.xlu0 %v1252
    %v1254 = vpop.xlane.xlu0 %1253
    %v1255 = vsel %vm119, %v1247, 0.0
    %1256 = vadd.xlane.f32.xlu0 %v1255
    %v1257 = vpop.xlane.xlu0 %1256
    %v1258 = vsel %vm119, %v1249, 0.0
    %1259 = vadd.xlane.f32.xlu0 %v1258
    %v1260 = vpop.xlane.xlu0 %1259
    %v1261 = vsel %vm119, %v1251, 0.0
    %1262 = vadd.xlane.f32.xlu0 %v1261
    %v1263 = vpop.xlane.xlu0 %1262
    %v1264 = vrcp.pop %v1254
    %v1265 = vmul.f32 %v1245, %v1264
    %v1266 = vrcp.pop %v1257
    %v1267 = vmul.f32 %v1247, %v1266
    %v1268 = vrcp.pop %v1260
    %v1269 = vmul.f32 %v1249, %v1268
    %v1270 = vrcp.pop %v1263
    %v1271 = vmul.f32 %v1251, %v1270
    %v1272 = vpack.c.bf16 %v1267, %v1265
    %v1273 = vpack.c.bf16 %v1271, %v1269
    %v1274 = vpack.c.bf16 %v1127, %v1124
    %v1275 = vpack.c.bf16 %v1135, %v1132
    %v1277 = vsel %vm119, %v1272, 0
    %v1280 = vsel %vm119, %v1273, 0
    %1282 = vmatprep.subr.bf16.mxu0 0
    %1283 = vmatpush1.bf16.msra.mxu0 %v1274
    %1284 = vmatprep.subr.bf16.mxu0 0
    %1285 = vmatpush1.bf16.msra.mxu0 %v1275
    %1286 = vmatprep.subr.bf16.mxu0 0
    %1287 = vmatpush1.bf16.msra.mxu0 0
    %1288 = vmatprep.subr.bf16.mxu0 0
    %1289 = vmatpush1.bf16.msra.mxu0 0
    %1290 = vmatprep.subr.bf16.mxu0 0
    %1291 = vmatpush1.bf16.msra.mxu0 0
    %1292 = vmatprep.subr.bf16.mxu0 0
    %1293 = vmatpush1.bf16.msra.mxu0 0
    %1294 = vmatprep.subr.bf16.mxu0 0
    %1295 = vmatpush1.bf16.msra.mxu0 0
    %1296 = vmatprep.subr.bf16.mxu0 0
    %1297 = vmatpush1.bf16.msra.mxu0 0
    %1298 = vmatprep.subr.bf16.mxu0 0
    %1299 = vmatpush1.bf16.msra.mxu0 0
    %1300 = vmatprep.subr.bf16.mxu0 0
    %1301 = vmatpush1.bf16.msra.mxu0 0
    %1302 = vmatprep.subr.bf16.mxu0 0
    %1303 = vmatpush1.bf16.msra.mxu0 0
    %1304 = vmatprep.subr.bf16.mxu0 0
    %1305 = vmatpush1.bf16.msra.mxu0 0
    %1306 = vmatprep.subr.bf16.mxu0 0
    %1307 = vmatpush1.bf16.msra.mxu0 0
    %1308 = vmatprep.subr.bf16.mxu0 0
    %1309 = vmatpush1.bf16.msra.mxu0 0
    %1310 = vmatprep.subr.bf16.mxu0 0
    %1311 = vmatpush1.bf16.msra.mxu0 0
    %1312 = vmatprep.subr.bf16.mxu0 0
    %1313 = vmatpush1.bf16.msra.mxu0 0
    %1314 = vmatprep.mubr.bf16.mxu0 0
    %1315 = vmatmul.mubr.bf16.gmra.mrb[0].mxu0 %v1277
    %v1316 = vpop.f32.mrb[0].mxu0
    %v1317 = vadd.f32 0.0, %v1316
    %v1318 = vpop.f32.mrb[0].mxu0
    %v1319 = vpop.f32.mrb[0].mxu0
    %v1320 = vadd.f32 0.0, %v1319
    %v1321 = vpop.f32.mrb[0].mxu0
    %1322 = vmatprep.mubr.bf16.mxu0 0
    %1323 = vmatmul.mubr.bf16.gmra.mrb[0].mxu0 %v1280
    %v1324 = vpop.f32.mrb[0].mxu0
    %v1325 = vadd.f32 0.0, %v1324
    %v1326 = vpop.f32.mrb[0].mxu0
    %v1327 = vpop.f32.mrb[0].mxu0
    %v1328 = vadd.f32 0.0, %v1327
    %v1329 = vpop.f32.mrb[0].mxu0
    %1330 = vdwg.mxu0
    %s1331 = scalar_lea.vmem [#allocation7], 2
    %v1332 = vld [vmem:[%s1331] sm:$0x1]
    %v1334 = vlaneseq
    %v1335 = vshrl.u32 %v1334, 7
    %v1336 = vsub.s32 0, %v1335
    %v1337 = vrot.slane %v1332, %v1336
    %v1339 = vadd.f32 %v1317, %v1337
    %v1340 = vadd.f32 %v1320, %v1337
    %v1341 = vadd.f32 %v1325, %v1337
    %v1342 = vadd.f32 %v1328, %v1337
    %v1343 = vsel %vm119, %v1339, 0.0
    %1344 = vadd.xlane.f32.xlu0 %v1343
    %v1345 = vpop.xlane.xlu0 %1344
    %v1346 = vsel %vm119, %v1340, 0.0
    %1347 = vadd.xlane.f32.xlu0 %v1346
    %v1348 = vpop.xlane.xlu0 %1347
    %v1349 = vsel %vm119, %v1341, 0.0
    %1350 = vadd.xlane.f32.xlu0 %v1349
    %v1351 = vpop.xlane.xlu0 %1350
    %v1352 = vsel %vm119, %v1342, 0.0
    %1353 = vadd.xlane.f32.xlu0 %v1352
    %v1354 = vpop.xlane.xlu0 %1353
    %v1355 = vmul.f32 %v1345, %v462
    %v1356 = vmul.f32 %v1348, %v462
    %v1357 = vmul.f32 %v1351, %v462
    %v1358 = vmul.f32 %v1354, %v462
    %v1359 = vsub.f32 %v1339, %v1355
    %v1360 = vsub.f32 %v1340, %v1356
    %v1361 = vsub.f32 %v1341, %v1357
    %v1362 = vsub.f32 %v1342, %v1358
    %v1363 = vmul.f32 %v1359, %v1359
    %v1364 = vmul.f32 %v1360, %v1360
    %v1365 = vmul.f32 %v1361, %v1361
    %v1366 = vmul.f32 %v1362, %v1362
    %v1367 = vsel %vm119, %v1363, 0.0
    %1368 = vadd.xlane.f32.xlu0 %v1367
    %v1369 = vpop.xlane.xlu0 %1368
    %v1370 = vsel %vm119, %v1364, 0.0
    %1371 = vadd.xlane.f32.xlu0 %v1370
    %v1372 = vpop.xlane.xlu0 %1371
    %v1373 = vsel %vm119, %v1365, 0.0
    %1374 = vadd.xlane.f32.xlu0 %v1373
    %v1375 = vpop.xlane.xlu0 %1374
    %v1376 = vsel %vm119, %v1366, 0.0
    %1377 = vadd.xlane.f32.xlu0 %v1376
    %v1378 = vpop.xlane.xlu0 %1377
    %v1379 = vmul.f32 %v1369, %v462
    %v1380 = vmul.f32 %v1372, %v462
    %v1381 = vmul.f32 %v1375, %v462
    %v1382 = vmul.f32 %v1378, %v462
    %v1383 = vadd.f32 %v1379, 1e-05
    %v1384 = vadd.f32 %v1380, 1e-05
    %v1385 = vadd.f32 %v1381, 1e-05
    %v1386 = vadd.f32 %v1382, 1e-05
    %v1387 = vrsqrt.pop %v1383
    %v1388 = vrsqrt.pop %v1384
    %v1389 = vrsqrt.pop %v1385
    %v1390 = vrsqrt.pop %v1386
    %v1391 = vmul.f32 %v1359, %v1387
    %v1392 = vmul.f32 %v1360, %v1388
    %v1393 = vmul.f32 %v1361, %v1389
    %v1394 = vmul.f32 %v1362, %v1390
    %s1395 = scalar_lea.vmem [#allocation8], 2
    %v1396 = vld [vmem:[%s1395] sm:$0x1]
    %v1398 = vlaneseq
    %v1399 = vshrl.u32 %v1398, 7
    %v1400 = vsub.s32 0, %v1399
    %v1401 = vrot.slane %v1396, %v1400
    %v1403 = vmul.f32 %v1391, %v1401
    %v1404 = vmul.f32 %v1392, %v1401
    %v1405 = vmul.f32 %v1393, %v1401
    %v1406 = vmul.f32 %v1394, %v1401
    %s1407 = scalar_lea.vmem [#allocation10], 2
    %v1408 = vld [vmem:[%s1407] sm:$0x1]
    %v1410 = vlaneseq
    %v1411 = vshrl.u32 %v1410, 7
    %v1412 = vsub.s32 0, %v1411
    %v1413 = vrot.slane %v1408, %v1412
    %v1415 = vadd.f32 %v1403, %v1413
    %v1416 = vadd.f32 %v1404, %v1413
    %v1417 = vadd.f32 %v1405, %v1413
    %v1418 = vadd.f32 %v1406, %v1413
    %v1419 = vmul.f32 %v1415, 0.5
    %v1420 = vmul.f32 %v1416, 0.5
    %v1421 = vmul.f32 %v1417, 0.5
    %v1422 = vmul.f32 %v1418, 0.5
    %v1423 = vmul.f32 %v1415, 0.70710677
    %v1424 = vmul.f32 %v1416, 0.70710677
    %v1425 = vmul.f32 %v1417, 0.70710677
    %v1426 = vmul.f32 %v1418, 0.70710677
    %v1427 = verf.f32.pop %v1423
    %v1428 = verf.f32.pop %v1424
    %v1429 = verf.f32.pop %v1425
    %v1430 = verf.f32.pop %v1426
    %v1431 = vadd.f32 %v1427, 1.0
    %v1432 = vadd.f32 %v1428, 1.0
    %v1433 = vadd.f32 %v1429, 1.0
    %v1434 = vadd.f32 %v1430, 1.0
    %v1435 = vmul.f32 %v1419, %v1431
    %v1436 = vmul.f32 %v1420, %v1432
    %v1437 = vmul.f32 %v1421, %v1433
    %v1438 = vmul.f32 %v1422, %v1434
    %s1439 = scalar_lea.vmem %s1, 48
    %v1440 = vld [vmem:[%s1439] sm:$0xf]
    %v1441 = vld [vmem:[%s1439 + $0x4] sm:$0xf]
    %v1442 = vld [vmem:[%s1439 + $0x8] sm:$0xf]
    %v1443 = vld [vmem:[%s1439 + $0xc] sm:$0xf]
    %v1444 = vpack.c.bf16 %v1436, %v1435
    %v1445 = vpack.c.bf16 %v1438, %v1437
    %v1450 = vunpack.c.l.b16 %v1440
    %v1451 = vunpack.c.l.b16 %v1441
    %v1452 = vunpack.c.l.b16 %v1442
    %v1453 = vunpack.c.l.b16 %v1443
    %v1454 = vpack.c.b16 %v1451, %v1450
    %v1455 = vpack.c.b16 %v1453, %v1452
    %v1457 = vsel %vm119, %v1454, 0
    %v1460 = vsel %vm119, %v1455, 0
    %1462 = vmatprep.subr.bf16.mxu0 0
    %1463 = vmatpush1.bf16.msra.mxu0 %v1444
    %1464 = vmatprep.subr.bf16.mxu0 0
    %1465 = vmatpush1.bf16.msra.mxu0 %v1445
    %1466 = vmatprep.subr.bf16.mxu0 0
    %1467 = vmatpush1.bf16.msra.mxu0 0
    %1468 = vmatprep.subr.bf16.mxu0 0
    %1469 = vmatpush1.bf16.msra.mxu0 0
    %1470 = vmatprep.subr.bf16.mxu0 0
    %1471 = vmatpush1.bf16.msra.mxu0 0
    %1472 = vmatprep.subr.bf16.mxu0 0
    %1473 = vmatpush1.bf16.msra.mxu0 0
    %1474 = vmatprep.subr.bf16.mxu0 0
    %1475 = vmatpush1.bf16.msra.mxu0 0
    %1476 = vmatprep.subr.bf16.mxu0 0
    %1477 = vmatpush1.bf16.msra.mxu0 0
    %1478 = vmatprep.subr.bf16.mxu0 0
    %1479 = vmatpush1.bf16.msra.mxu0 0
    %1480 = vmatprep.subr.bf16.mxu0 0
    %1481 = vmatpush1.bf16.msra.mxu0 0
    %1482 = vmatprep.subr.bf16.mxu0 0
    %1483 = vmatpush1.bf16.msra.mxu0 0
    %1484 = vmatprep.subr.bf16.mxu0 0
    %1485 = vmatpush1.bf16.msra.mxu0 0
    %1486 = vmatprep.subr.bf16.mxu0 0
    %1487 = vmatpush1.bf16.msra.mxu0 0
    %1488 = vmatprep.subr.bf16.mxu0 0
    %1489 = vmatpush1.bf16.msra.mxu0 0
    %1490 = vmatprep.subr.bf16.mxu0 0
    %1491 = vmatpush1.bf16.msra.mxu0 0
    %1492 = vmatprep.subr.bf16.mxu0 0
    %1493 = vmatpush1.bf16.msra.mxu0 0
    %1494 = vmatprep.mubr.bf16.mxu0 0
    %1495 = vmatmul.mubr.bf16.gmra.mrb[0].mxu0 %v1457
    %v1496 = vpop.f32.mrb[0].mxu0
    %v1497 = vadd.f32 0.0, %v1496
    %v1498 = vpop.f32.mrb[0].mxu0
    %v1499 = vpop.f32.mrb[0].mxu0
    %v1500 = vadd.f32 0.0, %v1499
    %v1501 = vpop.f32.mrb[0].mxu0
    %1502 = vmatprep.mubr.bf16.mxu0 0
    %1503 = vmatmul.mubr.bf16.gmra.mrb[0].mxu0 %v1460
    %v1504 = vpop.f32.mrb[0].mxu0
    %v1505 = vadd.f32 0.0, %v1504
    %v1506 = vpop.f32.mrb[0].mxu0
    %v1507 = vpop.f32.mrb[0].mxu0
    %v1508 = vadd.f32 0.0, %v1507
    %v1509 = vpop.f32.mrb[0].mxu0
    %1510 = vdwg.mxu0
    %v1511 = vpack.c.bf16 %v1500, %v1497
    %v1512 = vpack.c.bf16 %v1508, %v1505
    %s1513 = scalar_lea.vmem [#allocation5], 48
    %v1514 = vld [vmem:[%s1513] sm:$0xf]
    %v1515 = vld [vmem:[%s1513 + $0x4] sm:$0xf]
    %v1516 = vld [vmem:[%s1513 + $0x8] sm:$0xf]
    %v1517 = vld [vmem:[%s1513 + $0xc] sm:$0xf]
    %v1522 = vunpack.c.l.b16 %v1514
    %v1523 = vunpack.c.l.b16 %v1515
    %v1524 = vunpack.c.l.b16 %v1516
    %v1525 = vunpack.c.l.b16 %v1517
    %v1526 = vpack.c.b16 %v1523, %v1522
    %v1527 = vpack.c.b16 %v1525, %v1524
    %v1531 = vsel %vm119, %v1511, 0
    %v1534 = vsel %vm119, %v1512, 0
    %1536 = vmatprep.subr.bf16.mxu0 0
    %1537 = vmatpush1.bf16.msra.mxu0 %v1526
    %1538 = vmatprep.subr.bf16.mxu0 0
    %1539 = vmatpush1.bf16.msra.mxu0 %v1527
    %1540 = vmatprep.subr.bf16.mxu0 0
    %1541 = vmatpush1.bf16.msra.mxu0 0
    %1542 = vmatprep.subr.bf16.mxu0 0
    %1543 = vmatpush1.bf16.msra.mxu0 0
    %1544 = vmatprep.subr.bf16.mxu0 0
    %1545 = vmatpush1.bf16.msra.mxu0 0
    %1546 = vmatprep.subr.bf16.mxu0 0
    %1547 = vmatpush1.bf16.msra.mxu0 0
    %1548 = vmatprep.subr.bf16.mxu0 0
    %1549 = vmatpush1.bf16.msra.mxu0 0
    %1550 = vmatprep.subr.bf16.mxu0 0
    %1551 = vmatpush1.bf16.msra.mxu0 0
    %1552 = vmatprep.subr.bf16.mxu0 0
    %1553 = vmatpush1.bf16.msra.mxu0 0
    %1554 = vmatprep.subr.bf16.mxu0 0
    %1555 = vmatpush1.bf16.msra.mxu0 0
    %1556 = vmatprep.subr.bf16.mxu0 0
    %1557 = vmatpush1.bf16.msra.mxu0 0
    %1558 = vmatprep.subr.bf16.mxu0 0
    %1559 = vmatpush1.bf16.msra.mxu0 0
    %1560 = vmatprep.subr.bf16.mxu0 0
    %1561 = vmatpush1.bf16.msra.mxu0 0
    %1562 = vmatprep.subr.bf16.mxu0 0
    %1563 = vmatpush1.bf16.msra.mxu0 0
    %1564 = vmatprep.subr.bf16.mxu0 0
    %1565 = vmatpush1.bf16.msra.mxu0 0
    %1566 = vmatprep.subr.bf16.mxu0 0
    %1567 = vmatpush1.bf16.msra.mxu0 0
    %1568 = vmatprep.mubr.bf16.mxu0 0
    %1569 = vmatmul.mubr.bf16.gmra.mrb[0].mxu0 %v1531
    %v1570 = vpop.f32.mrb[0].mxu0
    %v1571 = vadd.f32 0.0, %v1570
    %v1572 = vpop.f32.mrb[0].mxu0
    %v1573 = vpop.f32.mrb[0].mxu0
    %v1574 = vadd.f32 0.0, %v1573
    %v1575 = vpop.f32.mrb[0].mxu0
    %1576 = vmatprep.mubr.bf16.mxu0 0
    %1577 = vmatmul.mubr.bf16.gmra.mrb[0].mxu0 %v1534
    %v1578 = vpop.f32.mrb[0].mxu0
    %v1579 = vadd.f32 0.0, %v1578
    %v1580 = vpop.f32.mrb[0].mxu0
    %v1581 = vpop.f32.mrb[0].mxu0
    %v1582 = vadd.f32 0.0, %v1581
    %v1583 = vpop.f32.mrb[0].mxu0
    %1584 = vdwg.mxu0
    %s1585 = scalar_lea.vmem %s4, 3
    %v1586 = vld [vmem:[%s1585] sm:$0x1]
    %v1588 = vsel %vm119, %v1586, 0
    %1590 = vmatprep.subr.bf16.mxu0 0
    %1591 = vmatpush1.bf16.xpose.msra.mxu0 %v1531
    %1592 = vmatprep.subr.bf16.mxu0 0
    %1593 = vmatpush1.bf16.xpose.msra.mxu0 %v1534
    %1594 = vmatprep.subr.bf16.mxu0 0
    %1595 = vmatpush1.bf16.xpose.msra.mxu0 0
    %1596 = vmatprep.subr.bf16.mxu0 0
    %1597 = vmatpush1.bf16.xpose.msra.mxu0 0
    %1598 = vmatprep.subr.bf16.mxu0 0
    %1599 = vmatpush1.bf16.xpose.msra.mxu0 0
    %1600 = vmatprep.subr.bf16.mxu0 0
    %1601 = vmatpush1.bf16.xpose.msra.mxu0 0
    %1602 = vmatprep.subr.bf16.mxu0 0
    %1603 = vmatpush1.bf16.xpose.msra.mxu0 0
    %1604 = vmatprep.subr.bf16.mxu0 0
    %1605 = vmatpush1.bf16.xpose.msra.mxu0 0
    %1606 = vmatprep.subr.bf16.mxu0 0
    %1607 = vmatpush1.bf16.xpose.msra.mxu0 0
    %1608 = vmatprep.subr.bf16.mxu0 0
    %1609 = vmatpush1.bf16.xpose.msra.mxu0 0
    %1610 = vmatprep.subr.bf16.mxu0 0
    %1611 = vmatpush1.bf16.xpose.msra.mxu0 0
    %1612 = vmatprep.subr.bf16.mxu0 0
    %1613 = vmatpush1.bf16.xpose.msra.mxu0 0
    %1614 = vmatprep.subr.bf16.mxu0 0
    %1615 = vmatpush1.bf16.xpose.msra.mxu0 0
    %1616 = vmatprep.subr.bf16.mxu0 0
    %1617 = vmatpush1.bf16.xpose.msra.mxu0 0
    %1618 = vmatprep.subr.bf16.mxu0 0
    %1619 = vmatpush1.bf16.xpose.msra.mxu0 0
    %1620 = vmatprep.subr.bf16.mxu0 0
    %1621 = vmatpush1.bf16.xpose.msra.mxu0 0
    %1622 = vmatprep.mubr.bf16.mxu0 0
    %1623 = vmatmul.mubr.bf16.gmra.mrb[0].mxu0 %v1588
    %v1624 = vpop.f32.mrb[0].mxu0
    %v1625 = vadd.f32 0.0, %v1624
    %v1626 = vpop.f32.mrb[0].mxu0
    %v1627 = vpop.f32.mrb[0].mxu0
    %v1628 = vpop.f32.mrb[0].mxu0
    %1629 = vdwg.mxu0
    %1631 = vset.pattern.permute.xlu0 32
    %1632 = vperm.xlu0 %1631, %v1571
    %v1633 = vpop.permute.xlu0 %1632
    %1636 = vset.pattern.permute.xlu0 32
    %1637 = vperm.xlu0 %1636, %v1574
    %v1638 = vpop.permute.xlu0 %1637
    %1641 = vset.pattern.permute.xlu0 32
    %1642 = vperm.xlu0 %1641, %v1579
    %v1643 = vpop.permute.xlu0 %1642
    %1646 = vset.pattern.permute.xlu0 32
    %1647 = vperm.xlu0 %1646, %v1582
    %v1648 = vpop.permute.xlu0 %1647
    %v1650 = vlaneseq
    %v1651 = vshrl.u32 %v1650, 7
    %v1652 = vsub.s32 0, %v1651
    %v1653 = vrot.slane %v1625, %v1652
    %v1654 = vadd.f32 %v1633, %v1653
    %v1655 = vadd.f32 %v1638, %v1653
    %v1656 = vadd.f32 %v1643, %v1653
    %v1657 = vadd.f32 %v1648, %v1653
    %s1658 = scalar_lea.vmem [#allocation2], 96
    %v1659 = vld [vmem:[%s1658] sm:$0xff]
    %v1660 = vld [vmem:[%s1658 + $0x8] sm:$0xff]
    %v1661 = vld [vmem:[%s1658 + $0x10] sm:$0xff]
    %v1662 = vld [vmem:[%s1658 + $0x18] sm:$0xff]
    %v1663 = vadd.f32 %v1654, %v1659
    %v1664 = vadd.f32 %v1655, %v1660
    %v1665 = vadd.f32 %v1656, %v1661
    %v1666 = vadd.f32 %v1657, %v1662
    %v1667 = vmul.f32 %v1663, 0.2
    %v1668 = vmul.f32 %v1664, 0.2
    %v1669 = vmul.f32 %v1665, 0.2
    %v1670 = vmul.f32 %v1666, 0.2
    %v1671 = vmax.f32 %v1663, %v1667
    %v1672 = vmax.f32 %v1664, %v1668
    %v1673 = vmax.f32 %v1665, %v1669
    %v1674 = vmax.f32 %v1666, %v1670
    %v1675 = vsel %vm119, %v1671, -inf
    %1676 = vmax.xlane.f32.xlu0 %v1675
    %v1677 = vpop.xlane.xlu0 %1676
    %v1678 = vsel %vm119, %v1672, -inf
    %1679 = vmax.xlane.f32.xlu0 %v1678
    %v1680 = vpop.xlane.xlu0 %1679
    %v1681 = vsel %vm119, %v1673, -inf
    %1682 = vmax.xlane.f32.xlu0 %v1681
    %v1683 = vpop.xlane.xlu0 %1682
    %v1684 = vsel %vm119, %v1674, -inf
    %1685 = vmax.xlane.f32.xlu0 %v1684
    %v1686 = vpop.xlane.xlu0 %1685
    %v1687 = vsub.f32 %v1671, %v1677
    %v1688 = vsub.f32 %v1672, %v1680
    %v1689 = vsub.f32 %v1673, %v1683
    %v1690 = vsub.f32 %v1674, %v1686
    %v1691 = vmul.f32 %v1687, 1.442695
    %v1692 = vpow.pop %v1691
    %v1693 = vmul.f32 %v1688, 1.442695
    %v1694 = vpow.pop %v1693
    %v1695 = vmul.f32 %v1689, 1.442695
    %v1696 = vpow.pop %v1695
    %v1697 = vmul.f32 %v1690, 1.442695
    %v1698 = vpow.pop %v1697
    %v1699 = vsel %vm119, %v1692, 0.0
    %1700 = vadd.xlane.f32.xlu0 %v1699
    %v1701 = vpop.xlane.xlu0 %1700
    %v1702 = vsel %vm119, %v1694, 0.0
    %1703 = vadd.xlane.f32.xlu0 %v1702
    %v1704 = vpop.xlane.xlu0 %1703
    %v1705 = vsel %vm119, %v1696, 0.0
    %1706 = vadd.xlane.f32.xlu0 %v1705
    %v1707 = vpop.xlane.xlu0 %1706
    %v1708 = vsel %vm119, %v1698, 0.0
    %1709 = vadd.xlane.f32.xlu0 %v1708
    %v1710 = vpop.xlane.xlu0 %1709
    %v1711 = vrcp.pop %v1701
    %v1712 = vmul.f32 %v1692, %v1711
    %v1713 = vrcp.pop %v1704
    %v1714 = vmul.f32 %v1694, %v1713
    %v1715 = vrcp.pop %v1707
    %v1716 = vmul.f32 %v1696, %v1715
    %v1717 = vrcp.pop %v1710
    %v1718 = vmul.f32 %v1698, %v1717
    %v1719 = vpack.c.bf16 %v1714, %v1712
    %v1720 = vpack.c.bf16 %v1718, %v1716
    %v1721 = vpack.c.bf16 %v1574, %v1571
    %v1722 = vpack.c.bf16 %v1582, %v1579
    %v1724 = vsel %vm119, %v1719, 0
    %v1727 = vsel %vm119, %v1720, 0
    %1729 = vmatprep.subr.bf16.mxu0 0
    %1730 = vmatpush1.bf16.msra.mxu0 %v1721
    %1731 = vmatprep.subr.bf16.mxu0 0
    %1732 = vmatpush1.bf16.msra.mxu0 %v1722
    %1733 = vmatprep.subr.bf16.mxu0 0
    %1734 = vmatpush1.bf16.msra.mxu0 0
    %1735 = vmatprep.subr.bf16.mxu0 0
    %1736 = vmatpush1.bf16.msra.mxu0 0
    %1737 = vmatprep.subr.bf16.mxu0 0
    %1738 = vmatpush1.bf16.msra.mxu0 0
    %1739 = vmatprep.subr.bf16.mxu0 0
    %1740 = vmatpush1.bf16.msra.mxu0 0
    %1741 = vmatprep.subr.bf16.mxu0 0
    %1742 = vmatpush1.bf16.msra.mxu0 0
    %1743 = vmatprep.subr.bf16.mxu0 0
    %1744 = vmatpush1.bf16.msra.mxu0 0
    %1745 = vmatprep.subr.bf16.mxu0 0
    %1746 = vmatpush1.bf16.msra.mxu0 0
    %1747 = vmatprep.subr.bf16.mxu0 0
    %1748 = vmatpush1.bf16.msra.mxu0 0
    %1749 = vmatprep.subr.bf16.mxu0 0
    %1750 = vmatpush1.bf16.msra.mxu0 0
    %1751 = vmatprep.subr.bf16.mxu0 0
    %1752 = vmatpush1.bf16.msra.mxu0 0
    %1753 = vmatprep.subr.bf16.mxu0 0
    %1754 = vmatpush1.bf16.msra.mxu0 0
    %1755 = vmatprep.subr.bf16.mxu0 0
    %1756 = vmatpush1.bf16.msra.mxu0 0
    %1757 = vmatprep.subr.bf16.mxu0 0
    %1758 = vmatpush1.bf16.msra.mxu0 0
    %1759 = vmatprep.subr.bf16.mxu0 0
    %1760 = vmatpush1.bf16.msra.mxu0 0
    %1761 = vmatprep.mubr.bf16.mxu0 0
    %1762 = vmatmul.mubr.bf16.gmra.mrb[0].mxu0 %v1724
    %v1763 = vpop.f32.mrb[0].mxu0
    %v1764 = vadd.f32 0.0, %v1763
    %v1765 = vpop.f32.mrb[0].mxu0
    %v1766 = vpop.f32.mrb[0].mxu0
    %v1767 = vadd.f32 0.0, %v1766
    %v1768 = vpop.f32.mrb[0].mxu0
    %1769 = vmatprep.mubr.bf16.mxu0 0
    %1770 = vmatmul.mubr.bf16.gmra.mrb[0].mxu0 %v1727
    %v1771 = vpop.f32.mrb[0].mxu0
    %v1772 = vadd.f32 0.0, %v1771
    %v1773 = vpop.f32.mrb[0].mxu0
    %v1774 = vpop.f32.mrb[0].mxu0
    %v1775 = vadd.f32 0.0, %v1774
    %v1776 = vpop.f32.mrb[0].mxu0
    %1777 = vdwg.mxu0
    %s1778 = scalar_lea.vmem [#allocation7], 3
    %v1779 = vld [vmem:[%s1778] sm:$0x1]
    %v1781 = vlaneseq
    %v1782 = vshrl.u32 %v1781, 7
    %v1783 = vsub.s32 0, %v1782
    %v1784 = vrot.slane %v1779, %v1783
    %v1786 = vadd.f32 %v1764, %v1784
    %v1787 = vadd.f32 %v1767, %v1784
    %v1788 = vadd.f32 %v1772, %v1784
    %v1789 = vadd.f32 %v1775, %v1784
    %v1790 = vsel %vm119, %v1786, 0.0
    %1791 = vadd.xlane.f32.xlu0 %v1790
    %v1792 = vpop.xlane.xlu0 %1791
    %v1793 = vsel %vm119, %v1787, 0.0
    %1794 = vadd.xlane.f32.xlu0 %v1793
    %v1795 = vpop.xlane.xlu0 %1794
    %v1796 = vsel %vm119, %v1788, 0.0
    %1797 = vadd.xlane.f32.xlu0 %v1796
    %v1798 = vpop.xlane.xlu0 %1797
    %v1799 = vsel %vm119, %v1789, 0.0
    %1800 = vadd.xlane.f32.xlu0 %v1799
    %v1801 = vpop.xlane.xlu0 %1800
    %v1802 = vmul.f32 %v1792, %v462
    %v1803 = vmul.f32 %v1795, %v462
    %v1804 = vmul.f32 %v1798, %v462
    %v1805 = vmul.f32 %v1801, %v462
    %v1806 = vsub.f32 %v1786, %v1802
    %v1807 = vsub.f32 %v1787, %v1803
    %v1808 = vsub.f32 %v1788, %v1804
    %v1809 = vsub.f32 %v1789, %v1805
    %v1810 = vmul.f32 %v1806, %v1806
    %v1811 = vmul.f32 %v1807, %v1807
    %v1812 = vmul.f32 %v1808, %v1808
    %v1813 = vmul.f32 %v1809, %v1809
    %v1814 = vsel %vm119, %v1810, 0.0
    %1815 = vadd.xlane.f32.xlu0 %v1814
    %v1816 = vpop.xlane.xlu0 %1815
    %v1817 = vsel %vm119, %v1811, 0.0
    %1818 = vadd.xlane.f32.xlu0 %v1817
    %v1819 = vpop.xlane.xlu0 %1818
    %v1820 = vsel %vm119, %v1812, 0.0
    %1821 = vadd.xlane.f32.xlu0 %v1820
    %v1822 = vpop.xlane.xlu0 %1821
    %v1823 = vsel %vm119, %v1813, 0.0
    %1824 = vadd.xlane.f32.xlu0 %v1823
    %v1825 = vpop.xlane.xlu0 %1824
    %v1826 = vmul.f32 %v1816, %v462
    %v1827 = vmul.f32 %v1819, %v462
    %v1828 = vmul.f32 %v1822, %v462
    %v1829 = vmul.f32 %v1825, %v462
    %v1830 = vadd.f32 %v1826, 1e-05
    %v1831 = vadd.f32 %v1827, 1e-05
    %v1832 = vadd.f32 %v1828, 1e-05
    %v1833 = vadd.f32 %v1829, 1e-05
    %v1834 = vrsqrt.pop %v1830
    %v1835 = vrsqrt.pop %v1831
    %v1836 = vrsqrt.pop %v1832
    %v1837 = vrsqrt.pop %v1833
    %v1838 = vmul.f32 %v1806, %v1834
    %v1839 = vmul.f32 %v1807, %v1835
    %v1840 = vmul.f32 %v1808, %v1836
    %v1841 = vmul.f32 %v1809, %v1837
    %s1842 = scalar_lea.vmem [#allocation8], 3
    %v1843 = vld [vmem:[%s1842] sm:$0x1]
    %v1845 = vlaneseq
    %v1846 = vshrl.u32 %v1845, 7
    %v1847 = vsub.s32 0, %v1846
    %v1848 = vrot.slane %v1843, %v1847
    %v1850 = vmul.f32 %v1838, %v1848
    %v1851 = vmul.f32 %v1839, %v1848
    %v1852 = vmul.f32 %v1840, %v1848
    %v1853 = vmul.f32 %v1841, %v1848
    %s1854 = scalar_lea.vmem [#allocation10], 3
    %v1855 = vld [vmem:[%s1854] sm:$0x1]
    %v1857 = vlaneseq
    %v1858 = vshrl.u32 %v1857, 7
    %v1859 = vsub.s32 0, %v1858
    %v1860 = vrot.slane %v1855, %v1859
    %v1862 = vadd.f32 %v1850, %v1860
    %v1863 = vadd.f32 %v1851, %v1860
    %v1864 = vadd.f32 %v1852, %v1860
    %v1865 = vadd.f32 %v1853, %v1860
    %v1866 = vmul.f32 %v1862, 0.5
    %v1867 = vmul.f32 %v1863, 0.5
    %v1868 = vmul.f32 %v1864, 0.5
    %v1869 = vmul.f32 %v1865, 0.5
    %v1870 = vmul.f32 %v1862, 0.70710677
    %v1871 = vmul.f32 %v1863, 0.70710677
    %v1872 = vmul.f32 %v1864, 0.70710677
    %v1873 = vmul.f32 %v1865, 0.70710677
    %v1874 = verf.f32.pop %v1870
    %v1875 = verf.f32.pop %v1871
    %v1876 = verf.f32.pop %v1872
    %v1877 = verf.f32.pop %v1873
    %v1878 = vadd.f32 %v1874, 1.0
    %v1879 = vadd.f32 %v1875, 1.0
    %v1880 = vadd.f32 %v1876, 1.0
    %v1881 = vadd.f32 %v1877, 1.0
    %v1882 = vmul.f32 %v1866, %v1878
    %v1883 = vmul.f32 %v1867, %v1879
    %v1884 = vmul.f32 %v1868, %v1880
    %v1885 = vmul.f32 %v1869, %v1881
    %1886 = vst.msk [vmem:[#allocation11] sm:$0xff] %vm119, %v1882
    %1887 = vst.msk [vmem:[#allocation11 + $0x8] sm:$0xff] %vm119, %v1883
    %1888 = vst.msk [vmem:[#allocation11 + $0x10] sm:$0xff] %vm119, %v1884
    %1889 = vst.msk [vmem:[#allocation11 + $0x18] sm:$0xff] %vm119, %v1885
    // Predicated region
    $region54: #{forward.1} parent=1 // pred_check
      _
    $region55: #{forward.1} parent=1 // pred_check_branch
      %1891 = sbr.rel (0) target = $region57
    $region56: #{forward.1} parent=1 // pred_region
      %s1893 = ssub.s32 512, 512
      %1894 = vsyncadd [#allocation4], %s1893
      %s1895 = sshll.u32 [#allocation11], 4
      %s1896 = int_to_ptr.vmem [resolvable:$true] %s1895
      %1901 = dma.vmem_to_hbm [thread:$0]  %s1896, 512, %s8, [#allocation4], 128, 128, 8
    $region57: #{forward.1} parent=1 // pred_fallthru
      _
    // Predicated region
    $region58: #{forward.1} parent=1 // pred_check
      _
    $region59: #{forward.1} parent=1 // pred_check_branch
      %1903 = sbr.rel (0) target = $region61
    $region60: #{forward.1} parent=1 // pred_region
      %1904 = dma.done [#allocation4], 512
    $region61: #{forward.1} parent=1 // pred_fallthru
      _
    %1905 = vsyncpa [#allocation3], 1
    %1906 = vsyncpa [#allocation6], 1
    %1907 = vsyncpa [#allocation9], 1
    %1908 = vsyncpa [#allocation4], 1

</llo_original>
